<compile_context>
chip_gen: v6e
topology: v6e:2x2x1
jax: 0.10.0
libtpu: 0.0.40
codegen_flags: <defaults>
</compile_context>

<pallas_src>
import jax
import jax.numpy as jnp
import numpy as np
from jax.experimental import pallas as pl
from jax.experimental.pallas import tpu as pltpu

# ----------------------------- config ---------------------------------------
SEQ = 8            # seq_len
BATCH = 2          # batch
EMBED = 32         # cfg.encoder.embed_dim
HEADS = 4          # cfg.encoder.attention_heads
HEAD_DIM = EMBED // HEADS
FFN = 64           # cfg.encoder.ffn_embed_dim
LN_EPS = 1e-5      # torch nn.LayerNorm default

NEG_MASK = -1e9        # finite stand-in for fairseq's -inf key-padding fill
ATTN_MASK_FILL = -1e8  # fairseq masked_fill value for float32 attn_mask


def _layer_norm(x, gamma, beta):
    # x: (S, E), gamma/beta: (1, E); matches torch.nn.LayerNorm (biased variance)
    mean = jnp.mean(x, axis=-1, keepdims=True)
    xc = x - mean
    var = jnp.mean(xc * xc, axis=-1, keepdims=True)
    return xc * jax.lax.rsqrt(var + LN_EPS) * gamma + beta


# ------------------------------- kernel --------------------------------------
def make_encoder_kernel(mxu_dtype):
    """Kernel factory; `mxu_dtype` selects the MXU operand dtype (f32 or bf16)."""

    def mm(a, b):
        return jnp.dot(a.astype(mxu_dtype), b.astype(mxu_dtype),
                       preferred_element_type=jnp.float32)

    def bmm(eq, a, b):
        return jnp.einsum(eq, a.astype(mxu_dtype), b.astype(mxu_dtype),
                          preferred_element_type=jnp.float32)

    def encoder_layer_kernel(x_ref, pad_ref, amask_ref, wqkv_ref, bqkv_ref, wo_ref,
                             w1_ref, b1_ref, w2_ref, vec_ref, o_ref):
        x = x_ref[0]                       # (S, E) f32 -- one batch element per step
        pad_bias = pad_ref[0]              # (1, S) additive key-padding bias
        attn_bias = amask_ref[...]         # (S, S) additive attn-mask bias
        vecs = vec_ref[...]                # (6, E) packed small vectors
        bo, g1, be1, bf2, g2, be2 = (vecs[0:1], vecs[1:2], vecs[2:3],
                                     vecs[3:4], vecs[4:5], vecs[5:6])

        # ---- fused QKV projection: single lane-dense (S,E)@(E,3E) MXU matmul.
        # q-scaling is pre-folded into the q weight columns / bias offline.
        qkv = mm(x, wqkv_ref[...]) + bqkv_ref[...]          # (S, 3E) f32

        def to_heads(base):                # static head slices -> (H, S, D)
            return jnp.stack(
                [qkv[:, base + h * HEAD_DIM: base + (h + 1) * HEAD_DIM]
                 for h in range(HEADS)], axis=0)

        qh = to_heads(0)                   # (H, S, D)
        kh = to_heads(EMBED)
        vh = to_heads(2 * EMBED)

        # ---- attention: head-batched contractions + masked softmax (all f32)
        s = bmm('hqd,hkd->hqk', qh, kh)                     # (H, S, S)
        s = s + attn_bias[None] + pad_bias[None]            # broadcast over heads/rows
        m = jnp.max(s, axis=-1, keepdims=True)
        p = jnp.exp(s - m)
        l = jnp.sum(p, axis=-1, keepdims=True)              # (H, S, 1)
        ctx = bmm('hqk,hkd->hqd', p, vh)                    # (H, S, D)
        # normalize AFTER the PV matmul: EUP reciprocal broadcast over D (not S)
        # (approx reciprocal: ~1e-3 rel err, inference-grade; use exact if training)
        ctx = ctx * pl.reciprocal(l, approx=True)

        # ---- output projection: heads merged inside the MXU f32 accumulator
        ctx2d = jnp.concatenate([ctx[h] for h in range(HEADS)], axis=-1)   # (S, E)
        attn = mm(ctx2d, wo_ref[...]) + bo

        # dropout = identity at inference; post-norm: add residual -> layernorm
        x1 = _layer_norm(x + attn, g1, be1)

        # ---- feed-forward -----------------------------------------------------
        h1 = jnp.maximum(mm(x1, w1_ref[...]) + b1_ref[...], 0.0)   # relu
        # TODO(synk): for cfg.activation_fn == 'gelu' swap in exact-erf gelu here.
        y = mm(h1, w2_ref[...]) + bf2
        x2 = _layer_norm(x1 + y, g2, be2)

        o_ref[0] = x2.astype(o_ref.dtype)

    return encoder_layer_kernel


# ------------------------------ wrapper ---------------------------------------
def pack_params(params, mxu_dtype):
    """One-time restaging of torch-layout weights into the kernel layout."""
    scaling = HEAD_DIM ** -0.5
    # fused QKV weight (E, 3E) with the fairseq q-scaling folded into the q columns
    wqkv = jnp.concatenate([params["wq"] * scaling, params["wk"], params["wv"]],
                           axis=1).astype(mxu_dtype)
    bqkv = jnp.concatenate([params["bq"] * scaling, params["bk"], params["bv"]],
                           axis=1).astype(jnp.float32)                     # (1, 3E)
    vecs = jnp.concatenate([params["bo"], params["ln1_g"], params["ln1_b"],
                            params["b2"], params["ln2_g"], params["ln2_b"]],
                           axis=0).astype(jnp.float32)                     # (6, E)
    return {
        "wqkv": wqkv, "bqkv": bqkv,
        "wo": params["wo"].astype(mxu_dtype),
        "w1": params["w1"].astype(mxu_dtype),
        "b1": params["b1"].astype(jnp.float32),
        "w2": params["w2"].astype(mxu_dtype),
        "vecs": vecs,
    }


def transformer_encoder_layer(x_sbe, encoder_padding_mask, attn_mask, packed,
                              mxu_dtype=jnp.bfloat16):
    """x_sbe: (seq, batch, embed) float32. Returns (seq, batch, embed)."""
    S, B, E = x_sbe.shape
    x_bse = jnp.transpose(x_sbe, (1, 0, 2))                     # (B, S, E)

    if encoder_padding_mask is None:
        pad_bias = jnp.zeros((B, 1, S), jnp.float32)
    else:
        pad_bias = jnp.where(encoder_padding_mask.astype(bool),
                             jnp.float32(NEG_MASK),
                             jnp.float32(0.0)).reshape(B, 1, S)
    if attn_mask is None:
        attn_bias = jnp.zeros((S, S), jnp.float32)
    else:
        attn_bias = jnp.where(attn_mask.astype(bool),
                              jnp.float32(ATTN_MASK_FILL), jnp.float32(0.0))

    args = (x_bse, pad_bias, attn_bias, packed["wqkv"], packed["bqkv"], packed["wo"],
            packed["w1"], packed["b1"], packed["w2"], packed["vecs"])

    def resident(shape):
        # constant block index: stays VMEM-resident across the batch grid loop
        return pl.BlockSpec(shape, lambda b: (0,) * len(shape))

    in_specs = [
        pl.BlockSpec((1, S, E), lambda b: (b, 0, 0)),   # activations: one batch/step
        pl.BlockSpec((1, 1, S), lambda b: (b, 0, 0)),   # per-batch key-padding bias
        resident((S, S)),                               # shared attn-mask bias
        resident(packed["wqkv"].shape),
        resident(packed["bqkv"].shape),
        resident(packed["wo"].shape),
        resident(packed["w1"].shape),
        resident(packed["b1"].shape),
        resident(packed["w2"].shape),
        resident(packed["vecs"].shape),
    ]

    # advisory cost hint so XLA schedules the custom call sensibly
    H, D, F = HEADS, HEAD_DIM, FFN
    itemsize = jnp.dtype(mxu_dtype).itemsize
    flops = B * (2 * S * E * 3 * E + 4 * H * S * S * D + 2 * S * E * E + 4 * S * E * F)
    transcendentals = B * (H * S * S + H * S + 2 * S)
    bytes_accessed = (2 * B * S * E * 4 + B * S * 4 + S * S * 4
                      + (4 * E * E + 2 * E * F) * itemsize + (3 * E + 6 * E + F) * 4)

    out = pl.pallas_call(
        make_encoder_kernel(mxu_dtype),
        out_shape=jax.ShapeDtypeStruct((B, S, E), jnp.float32),
        grid=(B,),
        in_specs=in_specs,
        out_specs=pl.BlockSpec((1, S, E), lambda b: (b, 0, 0)),
        compiler_params=pltpu.CompilerParams(
            dimension_semantics=("parallel",),       # megacore sharding on v7x
            vmem_limit_bytes=32 * 1024 * 1024),      # re-derive per generation at real dims
        cost_estimate=pl.CostEstimate(flops=flops, transcendentals=transcendentals,
                                      bytes_accessed=bytes_accessed),
    )(*args)

    return jnp.transpose(out, (1, 0, 2))             # back to (seq, batch, embed)


# --------------------------- float64 numpy reference --------------------------
def reference(x_sbe, encoder_padding_mask, attn_mask, p):
    xp = {k: np.asarray(v, np.float64) for k, v in p.items()}
    x = np.asarray(x_sbe, np.float64).transpose(1, 0, 2)        # (B, S, E)
    B, S, E = x.shape
    H, D = HEADS, HEAD_DIM

    bias = np.zeros((B, S, S), np.float64)
    if attn_mask is not None:
        bias += np.where(np.asarray(attn_mask, bool), ATTN_MASK_FILL, 0.0)[None]
    if encoder_padding_mask is not None:
        bias += np.where(np.asarray(encoder_padding_mask, bool),
                         NEG_MASK, 0.0)[:, None, :]

    def ln(z, g, b):
        m = z.mean(-1, keepdims=True)
        v = ((z - m) ** 2).mean(-1, keepdims=True)
        return (z - m) / np.sqrt(v + LN_EPS) * g + b

    scaling = D ** -0.5
    q = (x @ xp["wq"] + xp["bq"]) * scaling
    k = x @ xp["wk"] + xp["bk"]
    v = x @ xp["wv"] + xp["bv"]
    qh = q.reshape(B, S, H, D).transpose(0, 2, 1, 3)
    kh = k.reshape(B, S, H, D).transpose(0, 2, 1, 3)
    vh = v.reshape(B, S, H, D).transpose(0, 2, 1, 3)
    s = np.einsum("bhqd,bhkd->bhqk", qh, kh) + bias[:, None]
    s = s - s.max(-1, keepdims=True)
    pr = np.exp(s)
    pr = pr / pr.sum(-1, keepdims=True)
    o = np.einsum("bhqk,bhkd->bhqd", pr, vh).transpose(0, 2, 1, 3).reshape(B, S, E)
    attn = o @ xp["wo"] + xp["bo"]
    x1 = ln(x + attn, xp["ln1_g"], xp["ln1_b"])
    h = np.maximum(x1 @ xp["w1"] + xp["b1"], 0.0)
    x2 = ln(x1 + h @ xp["w2"] + xp["b2"], xp["ln2_g"], xp["ln2_b"])
    return x2.transpose(1, 0, 2)                                # (S, B, E)


# ------------------------------- main ----------------------------------------
if __name__ == "__main__":
    key = jax.random.PRNGKey(0)
    ks = jax.random.split(key, 16)

    # weights stored in (in, out) layout, i.e. already transposed vs nn.Linear.weight
    params = {
        "wq": jax.random.normal(ks[0], (EMBED, EMBED), jnp.float32) * 0.05,
        "bq": jax.random.normal(ks[1], (1, EMBED), jnp.float32) * 0.02,
        "wk": jax.random.normal(ks[2], (EMBED, EMBED), jnp.float32) * 0.05,
        "bk": jax.random.normal(ks[3], (1, EMBED), jnp.float32) * 0.02,
        "wv": jax.random.normal(ks[4], (EMBED, EMBED), jnp.float32) * 0.05,
        "bv": jax.random.normal(ks[5], (1, EMBED), jnp.float32) * 0.02,
        "wo": jax.random.normal(ks[6], (EMBED, EMBED), jnp.float32) * 0.05,
        "bo": jax.random.normal(ks[7], (1, EMBED), jnp.float32) * 0.02,
        "ln1_g": jnp.ones((1, EMBED), jnp.float32),
        "ln1_b": jnp.zeros((1, EMBED), jnp.float32),
        "w1": jax.random.normal(ks[8], (EMBED, FFN), jnp.float32) * 0.05,
        "b1": jax.random.normal(ks[9], (1, FFN), jnp.float32) * 0.02,
        "w2": jax.random.normal(ks[10], (FFN, EMBED), jnp.float32) * 0.05,
        "b2": jax.random.normal(ks[11], (1, EMBED), jnp.float32) * 0.02,
        "ln2_g": jnp.ones((1, EMBED), jnp.float32),
        "ln2_b": jnp.zeros((1, EMBED), jnp.float32),
    }

    x = jax.random.normal(ks[12], (SEQ, BATCH, EMBED), jnp.float32)
    # padding: last two positions of batch element 1 are padding
    encoder_padding_mask = jnp.array(
        [[0] * SEQ, [0] * (SEQ - 2) + [1, 1]], dtype=jnp.bool_)
    # a small strided-style attn_mask (tgt 0 cannot attend to src 7)
    attn_mask = jnp.zeros((SEQ, SEQ), jnp.int32).at[0, SEQ - 1].set(1)

    ref = reference(x, encoder_padding_mask, attn_mask, params)

    # 1) f32 MXU operand path (structural check vs the float64 reference; tolerance
    #    covers the EUP approx reciprocal and MXU matmul-pass rounding).
    packed_f32 = pack_params(params, jnp.float32)
    out_f32 = transformer_encoder_layer(x, encoder_padding_mask, attn_mask,
                                        packed_f32, mxu_dtype=jnp.float32)
    out_f32 = jax.block_until_ready(out_f32)
    assert out_f32.shape == (SEQ, BATCH, EMBED)
    assert np.allclose(np.asarray(out_f32), ref, atol=2e-2, rtol=2e-2)

    # 2) bf16 MXU operand path (the review-recommended production path on
    #    v5e/v6e/v7x); f32 accumulation, f32 softmax / LayerNorm.
    packed_bf16 = pack_params(params, jnp.bfloat16)
    out_bf16 = transformer_encoder_layer(x, encoder_padding_mask, attn_mask,
                                         packed_bf16, mxu_dtype=jnp.bfloat16)
    out_bf16 = jax.block_until_ready(out_bf16)
    assert out_bf16.shape == (SEQ, BATCH, EMBED)
    assert np.allclose(np.asarray(out_bf16), ref, atol=5e-2, rtol=5e-2)

    print("KERNEL_OK")
</pallas_src>

<mosaic_0001>
module attributes {stable_mosaic.version = 11 : i64} {
  func.func @encoder_layer_kernel(%arg0: i32, %arg1: memref<1x8x32xf32, #tpu.memory_space<vmem>>, %arg2: memref<1x1x8xf32, #tpu.memory_space<vmem>>, %arg3: memref<8x8xf32, #tpu.memory_space<vmem>>, %arg4: memref<32x96xf32, #tpu.memory_space<vmem>>, %arg5: memref<1x96xf32, #tpu.memory_space<vmem>>, %arg6: memref<32x32xf32, #tpu.memory_space<vmem>>, %arg7: memref<32x64xf32, #tpu.memory_space<vmem>>, %arg8: memref<1x64xf32, #tpu.memory_space<vmem>>, %arg9: memref<64x32xf32, #tpu.memory_space<vmem>>, %arg10: memref<6x32xf32, #tpu.memory_space<vmem>>, %arg11: memref<1x8x32xf32, #tpu.memory_space<vmem>>) attributes {dimension_semantics = [#tpu.dimension_semantics<parallel>], iteration_bounds = array<i64: 2>, scalar_prefetch = 0 : i64, scratch_operands = 0 : i64, tpu.core_type = #tpu.core_type<tc>, window_params = [{transform_indices = @transform_0, window_bounds = array<i64: 1, 8, 32>}, {transform_indices = @transform_1, window_bounds = array<i64: 1, 1, 8>}, {pipeline_mode = #tpu.pipeline_mode<synchronous>, transform_indices = @transform_2, window_bounds = array<i64: 8, 8>}, {pipeline_mode = #tpu.pipeline_mode<synchronous>, transform_indices = @transform_3, window_bounds = array<i64: 32, 96>}, {pipeline_mode = #tpu.pipeline_mode<synchronous>, transform_indices = @transform_4, window_bounds = array<i64: 1, 96>}, {pipeline_mode = #tpu.pipeline_mode<synchronous>, transform_indices = @transform_5, window_bounds = array<i64: 32, 32>}, {pipeline_mode = #tpu.pipeline_mode<synchronous>, transform_indices = @transform_6, window_bounds = array<i64: 32, 64>}, {pipeline_mode = #tpu.pipeline_mode<synchronous>, transform_indices = @transform_7, window_bounds = array<i64: 1, 64>}, {pipeline_mode = #tpu.pipeline_mode<synchronous>, transform_indices = @transform_8, window_bounds = array<i64: 64, 32>}, {pipeline_mode = #tpu.pipeline_mode<synchronous>, transform_indices = @transform_9, window_bounds = array<i64: 6, 32>}, {transform_indices = @transform_10, window_bounds = array<i64: 1, 8, 32>}]} {
    %c0 = arith.constant 0 : index
    %c0_0 = arith.constant 0 : index
    %c0_1 = arith.constant 0 : index
    %0 = vector.load %arg1[%c0, %c0_0, %c0_1] : memref<1x8x32xf32, #tpu.memory_space<vmem>>, vector<1x8x32xf32>
    %1 = vector.shape_cast %0 : vector<1x8x32xf32> to vector<8x32xf32>
    %c0_2 = arith.constant 0 : index
    %c0_3 = arith.constant 0 : index
    %c0_4 = arith.constant 0 : index
    %2 = vector.load %arg2[%c0_2, %c0_3, %c0_4] : memref<1x1x8xf32, #tpu.memory_space<vmem>>, vector<1x1x8xf32>
    %3 = vector.shape_cast %2 : vector<1x1x8xf32> to vector<1x8xf32>
    %c0_5 = arith.constant 0 : index
    %c0_6 = arith.constant 0 : index
    %4 = vector.load %arg3[%c0_5, %c0_6] : memref<8x8xf32, #tpu.memory_space<vmem>>, vector<8x8xf32>
    %c0_7 = arith.constant 0 : index
    %c0_8 = arith.constant 0 : index
    %5 = vector.load %arg10[%c0_7, %c0_8] : memref<6x32xf32, #tpu.memory_space<vmem>>, vector<6x32xf32>
    %6 = vector.extract_strided_slice %5 {offsets = [0, 0], sizes = [1, 32], strides = [1, 1]} : vector<6x32xf32> to vector<1x32xf32>
    %7 = vector.extract_strided_slice %5 {offsets = [1, 0], sizes = [1, 32], strides = [1, 1]} : vector<6x32xf32> to vector<1x32xf32>
    %8 = vector.extract_strided_slice %5 {offsets = [2, 0], sizes = [1, 32], strides = [1, 1]} : vector<6x32xf32> to vector<1x32xf32>
    %9 = vector.extract_strided_slice %5 {offsets = [3, 0], sizes = [1, 32], strides = [1, 1]} : vector<6x32xf32> to vector<1x32xf32>
    %10 = vector.extract_strided_slice %5 {offsets = [4, 0], sizes = [1, 32], strides = [1, 1]} : vector<6x32xf32> to vector<1x32xf32>
    %11 = vector.extract_strided_slice %5 {offsets = [5, 0], sizes = [1, 32], strides = [1, 1]} : vector<6x32xf32> to vector<1x32xf32>
    %c0_9 = arith.constant 0 : index
    %c0_10 = arith.constant 0 : index
    %12 = vector.load %arg4[%c0_9, %c0_10] : memref<32x96xf32, #tpu.memory_space<vmem>>, vector<32x96xf32>
    %cst = arith.constant dense<0.000000e+00> : vector<8x96xf32>
    %13 = tpu.matmul %1, %12, %cst {dimension_numbers = #tpu.dot_dimension_numbers<[1], [0], [0], [1], [0, 0, 1, 1], [], []>} : vector<8x32xf32>, vector<32x96xf32>, vector<8x96xf32> -> vector<8x96xf32>
    %c0_11 = arith.constant 0 : index
    %c0_12 = arith.constant 0 : index
    %14 = vector.load %arg5[%c0_11, %c0_12] : memref<1x96xf32, #tpu.memory_space<vmem>>, vector<1x96xf32>
    %15 = vector.broadcast %14 : vector<1x96xf32> to vector<8x96xf32>
    %16 = arith.addf %13, %15 : vector<8x96xf32>
    %17 = vector.extract_strided_slice %16 {offsets = [0, 0], sizes = [8, 8], strides = [1, 1]} : vector<8x96xf32> to vector<8x8xf32>
    %18 = vector.extract_strided_slice %16 {offsets = [0, 8], sizes = [8, 8], strides = [1, 1]} : vector<8x96xf32> to vector<8x8xf32>
    %19 = vector.extract_strided_slice %16 {offsets = [0, 16], sizes = [8, 8], strides = [1, 1]} : vector<8x96xf32> to vector<8x8xf32>
    %20 = vector.extract_strided_slice %16 {offsets = [0, 24], sizes = [8, 8], strides = [1, 1]} : vector<8x96xf32> to vector<8x8xf32>
    %21 = vector.shape_cast %17 : vector<8x8xf32> to vector<1x8x8xf32>
    %22 = vector.shape_cast %18 : vector<8x8xf32> to vector<1x8x8xf32>
    %23 = vector.shape_cast %19 : vector<8x8xf32> to vector<1x8x8xf32>
    %24 = vector.shape_cast %20 : vector<8x8xf32> to vector<1x8x8xf32>
    %25 = tpu.concatenate %21, %22, %23, %24 in 0 : vector<1x8x8xf32>, vector<1x8x8xf32>, vector<1x8x8xf32>, vector<1x8x8xf32> -> vector<4x8x8xf32>
    %26 = vector.extract_strided_slice %16 {offsets = [0, 32], sizes = [8, 8], strides = [1, 1]} : vector<8x96xf32> to vector<8x8xf32>
    %27 = vector.extract_strided_slice %16 {offsets = [0, 40], sizes = [8, 8], strides = [1, 1]} : vector<8x96xf32> to vector<8x8xf32>
    %28 = vector.extract_strided_slice %16 {offsets = [0, 48], sizes = [8, 8], strides = [1, 1]} : vector<8x96xf32> to vector<8x8xf32>
    %29 = vector.extract_strided_slice %16 {offsets = [0, 56], sizes = [8, 8], strides = [1, 1]} : vector<8x96xf32> to vector<8x8xf32>
    %30 = vector.shape_cast %26 : vector<8x8xf32> to vector<1x8x8xf32>
    %31 = vector.shape_cast %27 : vector<8x8xf32> to vector<1x8x8xf32>
    %32 = vector.shape_cast %28 : vector<8x8xf32> to vector<1x8x8xf32>
    %33 = vector.shape_cast %29 : vector<8x8xf32> to vector<1x8x8xf32>
    %34 = tpu.concatenate %30, %31, %32, %33 in 0 : vector<1x8x8xf32>, vector<1x8x8xf32>, vector<1x8x8xf32>, vector<1x8x8xf32> -> vector<4x8x8xf32>
    %35 = vector.extract_strided_slice %16 {offsets = [0, 64], sizes = [8, 8], strides = [1, 1]} : vector<8x96xf32> to vector<8x8xf32>
    %36 = vector.extract_strided_slice %16 {offsets = [0, 72], sizes = [8, 8], strides = [1, 1]} : vector<8x96xf32> to vector<8x8xf32>
    %37 = vector.extract_strided_slice %16 {offsets = [0, 80], sizes = [8, 8], strides = [1, 1]} : vector<8x96xf32> to vector<8x8xf32>
    %38 = vector.extract_strided_slice %16 {offsets = [0, 88], sizes = [8, 8], strides = [1, 1]} : vector<8x96xf32> to vector<8x8xf32>
    %39 = vector.shape_cast %35 : vector<8x8xf32> to vector<1x8x8xf32>
    %40 = vector.shape_cast %36 : vector<8x8xf32> to vector<1x8x8xf32>
    %41 = vector.shape_cast %37 : vector<8x8xf32> to vector<1x8x8xf32>
    %42 = vector.shape_cast %38 : vector<8x8xf32> to vector<1x8x8xf32>
    %43 = tpu.concatenate %39, %40, %41, %42 in 0 : vector<1x8x8xf32>, vector<1x8x8xf32>, vector<1x8x8xf32>, vector<1x8x8xf32> -> vector<4x8x8xf32>
    "tpu.trace_start"() <{level = 10 : i32, message = "hqd,hkd->hqk"}> : () -> ()
    %cst_13 = arith.constant dense<0.000000e+00> : vector<4x8x8xf32>
    %44 = tpu.matmul %25, %34, %cst_13 {dimension_numbers = #tpu.dot_dimension_numbers<[2], [2], [1], [1], [0, 0, 0, 1, 1, 1], [0], [0]>} : vector<4x8x8xf32>, vector<4x8x8xf32>, vector<4x8x8xf32> -> vector<4x8x8xf32>
    "tpu.trace_stop"() : () -> ()
    %45 = vector.shape_cast %4 : vector<8x8xf32> to vector<1x8x8xf32>
    %46 = vector.broadcast %45 : vector<1x8x8xf32> to vector<4x8x8xf32>
    %47 = arith.addf %44, %46 : vector<4x8x8xf32>
    %48 = vector.shape_cast %3 : vector<1x8xf32> to vector<1x1x8xf32>
    %49 = vector.broadcast %48 : vector<1x1x8xf32> to vector<4x8x8xf32>
    %50 = arith.addf %47, %49 : vector<4x8x8xf32>
    %cst_14 = arith.constant dense<0xFF800000> : vector<4x8xf32>
    %51 = vector.multi_reduction <maximumf>, %50, %cst_14 [2] : vector<4x8x8xf32> to vector<4x8xf32>
    %52 = vector.shape_cast %51 : vector<4x8xf32> to vector<4x8x1xf32>
    %53 = vector.broadcast %52 : vector<4x8x1xf32> to vector<4x8x8xf32>
    %54 = arith.subf %50, %53 : vector<4x8x8xf32>
    %55 = math.exp %54 : vector<4x8x8xf32>
    %cst_15 = arith.constant dense<0.000000e+00> : vector<4x8xf32>
    %56 = vector.multi_reduction <add>, %55, %cst_15 [2] : vector<4x8x8xf32> to vector<4x8xf32>
    %57 = vector.shape_cast %56 : vector<4x8xf32> to vector<4x8x1xf32>
    "tpu.trace_start"() <{level = 10 : i32, message = "hqk,hkd->hqd"}> : () -> ()
    %cst_16 = arith.constant dense<0.000000e+00> : vector<4x8x8xf32>
    %58 = tpu.matmul %55, %43, %cst_16 {dimension_numbers = #tpu.dot_dimension_numbers<[2], [1], [1], [2], [0, 0, 0, 1, 1, 2], [0], [0]>} : vector<4x8x8xf32>, vector<4x8x8xf32>, vector<4x8x8xf32> -> vector<4x8x8xf32>
    "tpu.trace_stop"() : () -> ()
    %59 = tpu.reciprocal %57 {approx = true} : vector<4x8x1xf32> -> vector<4x8x1xf32>
    %60 = vector.broadcast %59 : vector<4x8x1xf32> to vector<4x8x8xf32>
    %61 = arith.mulf %58, %60 : vector<4x8x8xf32>
    %62 = vector.extract_strided_slice %61 {offsets = [0, 0, 0], sizes = [1, 8, 8], strides = [1, 1, 1]} : vector<4x8x8xf32> to vector<1x8x8xf32>
    %63 = vector.shape_cast %62 : vector<1x8x8xf32> to vector<8x8xf32>
    %64 = vector.extract_strided_slice %61 {offsets = [1, 0, 0], sizes = [1, 8, 8], strides = [1, 1, 1]} : vector<4x8x8xf32> to vector<1x8x8xf32>
    %65 = vector.shape_cast %64 : vector<1x8x8xf32> to vector<8x8xf32>
    %66 = vector.extract_strided_slice %61 {offsets = [2, 0, 0], sizes = [1, 8, 8], strides = [1, 1, 1]} : vector<4x8x8xf32> to vector<1x8x8xf32>
    %67 = vector.shape_cast %66 : vector<1x8x8xf32> to vector<8x8xf32>
    %68 = vector.extract_strided_slice %61 {offsets = [3, 0, 0], sizes = [1, 8, 8], strides = [1, 1, 1]} : vector<4x8x8xf32> to vector<1x8x8xf32>
    %69 = vector.shape_cast %68 : vector<1x8x8xf32> to vector<8x8xf32>
    %70 = tpu.concatenate %63, %65, %67, %69 in 1 : vector<8x8xf32>, vector<8x8xf32>, vector<8x8xf32>, vector<8x8xf32> -> vector<8x32xf32>
    %c0_17 = arith.constant 0 : index
    %c0_18 = arith.constant 0 : index
    %71 = vector.load %arg6[%c0_17, %c0_18] : memref<32x32xf32, #tpu.memory_space<vmem>>, vector<32x32xf32>
    %cst_19 = arith.constant dense<0.000000e+00> : vector<8x32xf32>
    %72 = tpu.matmul %70, %71, %cst_19 {dimension_numbers = #tpu.dot_dimension_numbers<[1], [0], [0], [1], [0, 0, 1, 1], [], []>} : vector<8x32xf32>, vector<32x32xf32>, vector<8x32xf32> -> vector<8x32xf32>
    %73 = vector.broadcast %6 : vector<1x32xf32> to vector<8x32xf32>
    %74 = arith.addf %72, %73 : vector<8x32xf32>
    %75 = arith.addf %1, %74 : vector<8x32xf32>
    %cst_20 = arith.constant dense<0.000000e+00> : vector<8xf32>
    %76 = vector.multi_reduction <add>, %75, %cst_20 [1] : vector<8x32xf32> to vector<8xf32>
    %77 = vector.shape_cast %76 : vector<8xf32> to vector<8x1xf32>
    %cst_21 = arith.constant 3.200000e+01 : f32
    %78 = vector.broadcast %cst_21 : f32 to vector<8x1xf32>
    %79 = arith.divf %77, %78 : vector<8x1xf32>
    %80 = vector.broadcast %79 : vector<8x1xf32> to vector<8x32xf32>
    %81 = arith.subf %75, %80 : vector<8x32xf32>
    %82 = arith.mulf %81, %81 : vector<8x32xf32>
    %cst_22 = arith.constant dense<0.000000e+00> : vector<8xf32>
    %83 = vector.multi_reduction <add>, %82, %cst_22 [1] : vector<8x32xf32> to vector<8xf32>
    %84 = vector.shape_cast %83 : vector<8xf32> to vector<8x1xf32>
    %cst_23 = arith.constant 3.200000e+01 : f32
    %85 = vector.broadcast %cst_23 : f32 to vector<8x1xf32>
    %86 = arith.divf %84, %85 : vector<8x1xf32>
    %cst_24 = arith.constant 9.99999974E-6 : f32
    %87 = vector.broadcast %cst_24 : f32 to vector<8x1xf32>
    %88 = arith.addf %86, %87 : vector<8x1xf32>
    %89 = math.rsqrt %88 : vector<8x1xf32>
    %90 = vector.broadcast %89 : vector<8x1xf32> to vector<8x32xf32>
    %91 = arith.mulf %81, %90 : vector<8x32xf32>
    %92 = vector.broadcast %7 : vector<1x32xf32> to vector<8x32xf32>
    %93 = arith.mulf %91, %92 : vector<8x32xf32>
    %94 = vector.broadcast %8 : vector<1x32xf32> to vector<8x32xf32>
    %95 = arith.addf %93, %94 : vector<8x32xf32>
    %c0_25 = arith.constant 0 : index
    %c0_26 = arith.constant 0 : index
    %96 = vector.load %arg7[%c0_25, %c0_26] : memref<32x64xf32, #tpu.memory_space<vmem>>, vector<32x64xf32>
    %cst_27 = arith.constant dense<0.000000e+00> : vector<8x64xf32>
    %97 = tpu.matmul %95, %96, %cst_27 {dimension_numbers = #tpu.dot_dimension_numbers<[1], [0], [0], [1], [0, 0, 1, 1], [], []>} : vector<8x32xf32>, vector<32x64xf32>, vector<8x64xf32> -> vector<8x64xf32>
    %c0_28 = arith.constant 0 : index
    %c0_29 = arith.constant 0 : index
    %98 = vector.load %arg8[%c0_28, %c0_29] : memref<1x64xf32, #tpu.memory_space<vmem>>, vector<1x64xf32>
    %99 = vector.broadcast %98 : vector<1x64xf32> to vector<8x64xf32>
    %100 = arith.addf %97, %99 : vector<8x64xf32>
    %cst_30 = arith.constant 0.000000e+00 : f32
    %101 = vector.broadcast %cst_30 : f32 to vector<8x64xf32>
    %102 = arith.maximumf %100, %101 : vector<8x64xf32>
    %c0_31 = arith.constant 0 : index
    %c0_32 = arith.constant 0 : index
    %103 = vector.load %arg9[%c0_31, %c0_32] : memref<64x32xf32, #tpu.memory_space<vmem>>, vector<64x32xf32>
    %cst_33 = arith.constant dense<0.000000e+00> : vector<8x32xf32>
    %104 = tpu.matmul %102, %103, %cst_33 {dimension_numbers = #tpu.dot_dimension_numbers<[1], [0], [0], [1], [0, 0, 1, 1], [], []>} : vector<8x64xf32>, vector<64x32xf32>, vector<8x32xf32> -> vector<8x32xf32>
    %105 = vector.broadcast %9 : vector<1x32xf32> to vector<8x32xf32>
    %106 = arith.addf %104, %105 : vector<8x32xf32>
    %107 = arith.addf %95, %106 : vector<8x32xf32>
    %cst_34 = arith.constant dense<0.000000e+00> : vector<8xf32>
    %108 = vector.multi_reduction <add>, %107, %cst_34 [1] : vector<8x32xf32> to vector<8xf32>
    %109 = vector.shape_cast %108 : vector<8xf32> to vector<8x1xf32>
    %cst_35 = arith.constant 3.200000e+01 : f32
    %110 = vector.broadcast %cst_35 : f32 to vector<8x1xf32>
    %111 = arith.divf %109, %110 : vector<8x1xf32>
    %112 = vector.broadcast %111 : vector<8x1xf32> to vector<8x32xf32>
    %113 = arith.subf %107, %112 : vector<8x32xf32>
    %114 = arith.mulf %113, %113 : vector<8x32xf32>
    %cst_36 = arith.constant dense<0.000000e+00> : vector<8xf32>
    %115 = vector.multi_reduction <add>, %114, %cst_36 [1] : vector<8x32xf32> to vector<8xf32>
    %116 = vector.shape_cast %115 : vector<8xf32> to vector<8x1xf32>
    %cst_37 = arith.constant 3.200000e+01 : f32
    %117 = vector.broadcast %cst_37 : f32 to vector<8x1xf32>
    %118 = arith.divf %116, %117 : vector<8x1xf32>
    %cst_38 = arith.constant 9.99999974E-6 : f32
    %119 = vector.broadcast %cst_38 : f32 to vector<8x1xf32>
    %120 = arith.addf %118, %119 : vector<8x1xf32>
    %121 = math.rsqrt %120 : vector<8x1xf32>
    %122 = vector.broadcast %121 : vector<8x1xf32> to vector<8x32xf32>
    %123 = arith.mulf %113, %122 : vector<8x32xf32>
    %124 = vector.broadcast %10 : vector<1x32xf32> to vector<8x32xf32>
    %125 = arith.mulf %123, %124 : vector<8x32xf32>
    %126 = vector.broadcast %11 : vector<1x32xf32> to vector<8x32xf32>
    %127 = arith.addf %125, %126 : vector<8x32xf32>
    %c0_39 = arith.constant 0 : index
    %c0_40 = arith.constant 0 : index
    %c0_41 = arith.constant 0 : index
    %128 = vector.load %arg11[%c0_39, %c0_40, %c0_41] : memref<1x8x32xf32, #tpu.memory_space<vmem>>, vector<1x8x32xf32>
    %129 = vector.shape_cast %128 : vector<1x8x32xf32> to vector<8x32xf32>
    %130 = vector.shape_cast %127 : vector<8x32xf32> to vector<1x8x32xf32>
    tpu.vector_store %arg11[%c0_39, %c0_40, %c0_41], %130 {strides = array<i32>} : memref<1x8x32xf32, #tpu.memory_space<vmem>>, vector<1x8x32xf32>,
    return
  }
  func.func @transform_0(%arg0: i32) -> (i32, i32, i32) {
    %c0_i32 = arith.constant 0 : i32
    %c0_i32_0 = arith.constant 0 : i32
    %c0_i32_1 = arith.constant 0 : i32
    return %arg0, %c0_i32, %c0_i32_0 : i32, i32, i32
  }
  func.func @transform_1(%arg0: i32) -> (i32, i32, i32) {
    %c0_i32 = arith.constant 0 : i32
    %c0_i32_0 = arith.constant 0 : i32
    %c0_i32_1 = arith.constant 0 : i32
    return %arg0, %c0_i32, %c0_i32_0 : i32, i32, i32
  }
  func.func @transform_2(%arg0: i32) -> (i32, i32) {
    %c0_i32 = arith.constant 0 : i32
    %c0_i32_0 = arith.constant 0 : i32
    %c0_i32_1 = arith.constant 0 : i32
    return %c0_i32, %c0_i32_0 : i32, i32
  }
  func.func @transform_3(%arg0: i32) -> (i32, i32) {
    %c0_i32 = arith.constant 0 : i32
    %c0_i32_0 = arith.constant 0 : i32
    %c0_i32_1 = arith.constant 0 : i32
    return %c0_i32, %c0_i32_0 : i32, i32
  }
  func.func @transform_4(%arg0: i32) -> (i32, i32) {
    %c0_i32 = arith.constant 0 : i32
    %c0_i32_0 = arith.constant 0 : i32
    %c0_i32_1 = arith.constant 0 : i32
    return %c0_i32, %c0_i32_0 : i32, i32
  }
  func.func @transform_5(%arg0: i32) -> (i32, i32) {
    %c0_i32 = arith.constant 0 : i32
    %c0_i32_0 = arith.constant 0 : i32
    %c0_i32_1 = arith.constant 0 : i32
    return %c0_i32, %c0_i32_0 : i32, i32
  }
  func.func @transform_6(%arg0: i32) -> (i32, i32) {
    %c0_i32 = arith.constant 0 : i32
    %c0_i32_0 = arith.constant 0 : i32
    %c0_i32_1 = arith.constant 0 : i32
    return %c0_i32, %c0_i32_0 : i32, i32
  }
  func.func @transform_7(%arg0: i32) -> (i32, i32) {
    %c0_i32 = arith.constant 0 : i32
    %c0_i32_0 = arith.constant 0 : i32
    %c0_i32_1 = arith.constant 0 : i32
    return %c0_i32, %c0_i32_0 : i32, i32
  }
  func.func @transform_8(%arg0: i32) -> (i32, i32) {
    %c0_i32 = arith.constant 0 : i32
    %c0_i32_0 = arith.constant 0 : i32
    %c0_i32_1 = arith.constant 0 : i32
    return %c0_i32, %c0_i32_0 : i32, i32
  }
  func.func @transform_9(%arg0: i32) -> (i32, i32) {
    %c0_i32 = arith.constant 0 : i32
    %c0_i32_0 = arith.constant 0 : i32
    %c0_i32_1 = arith.constant 0 : i32
    return %c0_i32, %c0_i32_0 : i32, i32
  }
  func.func @transform_10(%arg0: i32) -> (i32, i32, i32) {
    %c0_i32 = arith.constant 0 : i32
    %c0_i32_0 = arith.constant 0 : i32
    %c0_i32_1 = arith.constant 0 : i32
    return %arg0, %c0_i32, %c0_i32_0 : i32, i32, i32
  }
}

</mosaic_0001>

<llo_original>
// kernel: tpu_custom_call.1
$region0: #{tpu_custom_call.1}
  #allocation0 [shape = 'u32[]', space=smem, size = 0x4, offset = 0x4, fixed_abs, tag = 'smem constant byte address 0x4 - core index']
  #allocation1 [shape = 'u32[144,128]{1,0:T(1,128)}', space=vmem, size = 0x12000, scoped, tag = 'internal scratch']
  %s0 = inlined_call_operand.hbm [shape: f32[2,8,32], index: 0, kind: input, shape index: {}]
  %s1 = inlined_call_operand.hbm [shape: f32[2,1,8], index: 1, kind: input, shape index: {}]
  %s2 = inlined_call_operand.hbm [shape: f32[8,8], index: 2, kind: input, shape index: {}]
  %s3 = inlined_call_operand.vmem [shape: f32[32,96], index: 3, kind: input, shape index: {}]
  %s4 = inlined_call_operand.vmem [shape: f32[1,96], index: 4, kind: input, shape index: {}]
  %s5 = inlined_call_operand.vmem [shape: f32[32,32], index: 5, kind: input, shape index: {}]
  %s6 = inlined_call_operand.vmem [shape: f32[32,64], index: 6, kind: input, shape index: {}]
  %s7 = inlined_call_operand.vmem [shape: f32[1,64], index: 7, kind: input, shape index: {}]
  %s8 = inlined_call_operand.vmem [shape: f32[64,32], index: 8, kind: input, shape index: {}]
  %s9 = inlined_call_operand.vmem [shape: f32[6,32], index: 9, kind: input, shape index: {}]
  %s10 = inlined_call_operand.hbm [shape: f32[2,8,32], index: 10, kind: output, shape index: {}]
  %s11 = sld [smem:[#allocation0]]
  $region85: #{tpu_custom_call.1} parent=0
    _
  %s13 = ssub.s32 1, %s11
  %s14 = scalar_select 0, %s13, %s11
  $region1: #{tpu_custom_call.1} parent=0
    #allocation2 [shape = 'u8[8192]{0}', space=vmem, size = 0x2000, scoped, tag = 'input window, operand 0']
    #allocation3 [shape = 's32[2]{0}', space=sflag, size = 0x8, scoped, tag = 'scoped memory for tpu_custom_call.1']
    #allocation4 [shape = 's32[2]{0}', space=sflag, size = 0x8, scoped, tag = 'scoped memory for tpu_custom_call.1']
    #allocation5 [shape = 'u8[1024]{0}', space=vmem, size = 0x400, scoped, tag = 'input window, operand 1']
    #allocation6 [shape = 's32[2]{0}', space=sflag, size = 0x8, scoped, tag = 'scoped memory for tpu_custom_call.1']
    #allocation7 [shape = 'u8[4096]{0}', space=vmem, size = 0x1000, scoped, tag = 'input window, operand 2, single buffered']
    #allocation8 [shape = 'u8[8192]{0}', space=vmem, size = 0x2000, scoped, tag = 'output window, operand 0']
    %15 = vsyncpa [#allocation3], 0
    %s16 = scalar_lea.sflag [#allocation3], 1
    %17 = vsyncpa %s16, 0
    %18 = vsyncpa [#allocation6], 0
    %s19 = scalar_lea.sflag [#allocation6], 1
    %20 = vsyncpa %s19, 0
    %21 = vsyncpa [#allocation4], 0
    %s22 = scalar_lea.sflag [#allocation4], 1
    %23 = vsyncpa %s22, 0
    loop: start=0, step=1, limit=4
    $region2: #{tpu_custom_call.1} parent=1 // loop_pre_header
      _
    $region3: #{tpu_custom_call.1} parent=1 // loop_header
      %s25 = sphi 0, %s29
      %p26 = scmp.ge.s32.totalorder %s25, 4
      %s35 = sphi 0, %s37
      %s38 = sphi 0, %s35
      %s39 = sphi 0, %s38
      %s55 = sphi 0, %s39
      %s61 = sphi 0, %s63
      %s64 = sphi 0, %s61
      %s65 = sphi 0, %s64
      %s81 = sphi 0, %s65
      %s85 = sphi 0, %s85
      %s87 = sphi 0, %s85
      %s88 = sphi 0, %s87
      %s102 = sphi 0, %s88
      %s106 = sphi 0, %s106
      %s108 = sphi 0, %s106
      %s109 = sphi 0, %s108
      %s123 = sphi 0, %s109
      %s127 = sphi 0, %s127
      %s129 = sphi 0, %s127
      %s130 = sphi 0, %s129
      %s144 = sphi 0, %s130
      %s148 = sphi 0, %s148
      %s150 = sphi 0, %s148
      %s151 = sphi 0, %s150
      %s165 = sphi 0, %s151
      %s169 = sphi 0, %s169
      %s171 = sphi 0, %s169
      %s172 = sphi 0, %s171
      %s186 = sphi 0, %s172
      %s190 = sphi 0, %s190
      %s192 = sphi 0, %s190
      %s193 = sphi 0, %s192
      %s207 = sphi 0, %s193
      %s211 = sphi 0, %s211
      %s213 = sphi 0, %s211
      %s214 = sphi 0, %s213
      %s228 = sphi 0, %s214
      %s232 = sphi 0, %s232
      %s234 = sphi 0, %s232
      %s235 = sphi 0, %s234
      %s249 = sphi 0, %s235
      %s255 = sphi 0, %s257
      %s258 = sphi 0, %s255
      %s259 = sphi 0, %s258
      %s275 = sphi 0, %s259
    $region4: #{tpu_custom_call.1} parent=1 // loop_header_branch
      %28 = sbr.rel (%p26) target = $region8
    $region5: #{tpu_custom_call.1} parent=1 // loop_body
      %s30 = ssub.s32 %s25, 1
      %s31 = ssub.s32 %s25, 2
      %s32 = sadd.s32 %s25, 1
      %s33 = ssub.s32 %s25, %s32
      %p34 = scmp.eq.s32.totalorder %s33, 0
      %s36 = sadd.s32 %s35, 1
      %s37 = scalar_select %p34, %s35, %s36
      %p40 = pneg %p34
      %p41 = scmp.eq.s32.totalorder %s25, 1
      %p42 = por %p40, %p41
      %p43 = scmp.ne.s32.totalorder %s35, %s38
      %p44 = scmp.eq.s32.totalorder %s25, 0
      %p45 = por %p43, %p44
      %p46 = scmp.ne.s32.totalorder %s35, %s38
      %p47 = scmp.eq.s32.totalorder %s30, 1
      %p48 = por %p46, %p47
      %p49 = scmp.ne.s32.totalorder %s38, %s39
      %p50 = scmp.eq.s32.totalorder %s30, 0
      %p51 = por %p49, %p50
      %p52 = scmp.ne.s32.totalorder %s38, %s39
      %p53 = scmp.eq.s32.totalorder %s31, 1
      %p54 = por %p52, %p53
      %p56 = scmp.ne.s32.totalorder %s39, %s55
      %p57 = scmp.eq.s32.totalorder %s31, 0
      %p58 = por %p56, %p57
      %s59 = ssub.s32 %s25, %s32
      %p60 = scmp.eq.s32.totalorder %s59, 0
      %s62 = sadd.s32 %s61, 1
      %s63 = scalar_select %p60, %s61, %s62
      %p66 = pneg %p60
      %p67 = scmp.eq.s32.totalorder %s25, 1
      %p68 = por %p66, %p67
      %p69 = scmp.ne.s32.totalorder %s61, %s64
      %p70 = scmp.eq.s32.totalorder %s25, 0
      %p71 = por %p69, %p70
      %p72 = scmp.ne.s32.totalorder %s61, %s64
      %p73 = scmp.eq.s32.totalorder %s30, 1
      %p74 = por %p72, %p73
      %p75 = scmp.ne.s32.totalorder %s64, %s65
      %p76 = scmp.eq.s32.totalorder %s30, 0
      %p77 = por %p75, %p76
      %p78 = scmp.ne.s32.totalorder %s64, %s65
      %p79 = scmp.eq.s32.totalorder %s31, 1
      %p80 = por %p78, %p79
      %p82 = scmp.ne.s32.totalorder %s65, %s81
      %p83 = scmp.eq.s32.totalorder %s31, 0
      %p84 = por %p82, %p83
      %s86 = sadd.s32 %s85, 1
      %p89 = scmp.eq.s32.totalorder %s25, 1
      %p90 = scmp.ne.s32.totalorder %s85, %s87
      %p91 = scmp.eq.s32.totalorder %s25, 0
      %p92 = por %p90, %p91
      %p93 = scmp.ne.s32.totalorder %s85, %s87
      %p94 = scmp.eq.s32.totalorder %s30, 1
      %p95 = por %p93, %p94
      %p96 = scmp.ne.s32.totalorder %s87, %s88
      %p97 = scmp.eq.s32.totalorder %s30, 0
      %p98 = por %p96, %p97
      %p99 = scmp.ne.s32.totalorder %s87, %s88
      %p100 = scmp.eq.s32.totalorder %s31, 1
      %p101 = por %p99, %p100
      %p103 = scmp.ne.s32.totalorder %s88, %s102
      %p104 = scmp.eq.s32.totalorder %s31, 0
      %p105 = por %p103, %p104
      %s107 = sadd.s32 %s106, 1
      %p110 = scmp.eq.s32.totalorder %s25, 1
      %p111 = scmp.ne.s32.totalorder %s106, %s108
      %p112 = scmp.eq.s32.totalorder %s25, 0
      %p113 = por %p111, %p112
      %p114 = scmp.ne.s32.totalorder %s106, %s108
      %p115 = scmp.eq.s32.totalorder %s30, 1
      %p116 = por %p114, %p115
      %p117 = scmp.ne.s32.totalorder %s108, %s109
      %p118 = scmp.eq.s32.totalorder %s30, 0
      %p119 = por %p117, %p118
      %p120 = scmp.ne.s32.totalorder %s108, %s109
      %p121 = scmp.eq.s32.totalorder %s31, 1
      %p122 = por %p120, %p121
      %p124 = scmp.ne.s32.totalorder %s109, %s123
      %p125 = scmp.eq.s32.totalorder %s31, 0
      %p126 = por %p124, %p125
      %s128 = sadd.s32 %s127, 1
      %p131 = scmp.eq.s32.totalorder %s25, 1
      %p132 = scmp.ne.s32.totalorder %s127, %s129
      %p133 = scmp.eq.s32.totalorder %s25, 0
      %p134 = por %p132, %p133
      %p135 = scmp.ne.s32.totalorder %s127, %s129
      %p136 = scmp.eq.s32.totalorder %s30, 1
      %p137 = por %p135, %p136
      %p138 = scmp.ne.s32.totalorder %s129, %s130
      %p139 = scmp.eq.s32.totalorder %s30, 0
      %p140 = por %p138, %p139
      %p141 = scmp.ne.s32.totalorder %s129, %s130
      %p142 = scmp.eq.s32.totalorder %s31, 1
      %p143 = por %p141, %p142
      %p145 = scmp.ne.s32.totalorder %s130, %s144
      %p146 = scmp.eq.s32.totalorder %s31, 0
      %p147 = por %p145, %p146
      %s149 = sadd.s32 %s148, 1
      %p152 = scmp.eq.s32.totalorder %s25, 1
      %p153 = scmp.ne.s32.totalorder %s148, %s150
      %p154 = scmp.eq.s32.totalorder %s25, 0
      %p155 = por %p153, %p154
      %p156 = scmp.ne.s32.totalorder %s148, %s150
      %p157 = scmp.eq.s32.totalorder %s30, 1
      %p158 = por %p156, %p157
      %p159 = scmp.ne.s32.totalorder %s150, %s151
      %p160 = scmp.eq.s32.totalorder %s30, 0
      %p161 = por %p159, %p160
      %p162 = scmp.ne.s32.totalorder %s150, %s151
      %p163 = scmp.eq.s32.totalorder %s31, 1
      %p164 = por %p162, %p163
      %p166 = scmp.ne.s32.totalorder %s151, %s165
      %p167 = scmp.eq.s32.totalorder %s31, 0
      %p168 = por %p166, %p167
      %s170 = sadd.s32 %s169, 1
      %p173 = scmp.eq.s32.totalorder %s25, 1
      %p174 = scmp.ne.s32.totalorder %s169, %s171
      %p175 = scmp.eq.s32.totalorder %s25, 0
      %p176 = por %p174, %p175
      %p177 = scmp.ne.s32.totalorder %s169, %s171
      %p178 = scmp.eq.s32.totalorder %s30, 1
      %p179 = por %p177, %p178
      %p180 = scmp.ne.s32.totalorder %s171, %s172
      %p181 = scmp.eq.s32.totalorder %s30, 0
      %p182 = por %p180, %p181
      %p183 = scmp.ne.s32.totalorder %s171, %s172
      %p184 = scmp.eq.s32.totalorder %s31, 1
      %p185 = por %p183, %p184
      %p187 = scmp.ne.s32.totalorder %s172, %s186
      %p188 = scmp.eq.s32.totalorder %s31, 0
      %p189 = por %p187, %p188
      %s191 = sadd.s32 %s190, 1
      %p194 = scmp.eq.s32.totalorder %s25, 1
      %p195 = scmp.ne.s32.totalorder %s190, %s192
      %p196 = scmp.eq.s32.totalorder %s25, 0
      %p197 = por %p195, %p196
      %p198 = scmp.ne.s32.totalorder %s190, %s192
      %p199 = scmp.eq.s32.totalorder %s30, 1
      %p200 = por %p198, %p199
      %p201 = scmp.ne.s32.totalorder %s192, %s193
      %p202 = scmp.eq.s32.totalorder %s30, 0
      %p203 = por %p201, %p202
      %p204 = scmp.ne.s32.totalorder %s192, %s193
      %p205 = scmp.eq.s32.totalorder %s31, 1
      %p206 = por %p204, %p205
      %p208 = scmp.ne.s32.totalorder %s193, %s207
      %p209 = scmp.eq.s32.totalorder %s31, 0
      %p210 = por %p208, %p209
      %s212 = sadd.s32 %s211, 1
      %p215 = scmp.eq.s32.totalorder %s25, 1
      %p216 = scmp.ne.s32.totalorder %s211, %s213
      %p217 = scmp.eq.s32.totalorder %s25, 0
      %p218 = por %p216, %p217
      %p219 = scmp.ne.s32.totalorder %s211, %s213
      %p220 = scmp.eq.s32.totalorder %s30, 1
      %p221 = por %p219, %p220
      %p222 = scmp.ne.s32.totalorder %s213, %s214
      %p223 = scmp.eq.s32.totalorder %s30, 0
      %p224 = por %p222, %p223
      %p225 = scmp.ne.s32.totalorder %s213, %s214
      %p226 = scmp.eq.s32.totalorder %s31, 1
      %p227 = por %p225, %p226
      %p229 = scmp.ne.s32.totalorder %s214, %s228
      %p230 = scmp.eq.s32.totalorder %s31, 0
      %p231 = por %p229, %p230
      %s233 = sadd.s32 %s232, 1
      %p236 = scmp.eq.s32.totalorder %s25, 1
      %p237 = scmp.ne.s32.totalorder %s232, %s234
      %p238 = scmp.eq.s32.totalorder %s25, 0
      %p239 = por %p237, %p238
      %p240 = scmp.ne.s32.totalorder %s232, %s234
      %p241 = scmp.eq.s32.totalorder %s30, 1
      %p242 = por %p240, %p241
      %p243 = scmp.ne.s32.totalorder %s234, %s235
      %p244 = scmp.eq.s32.totalorder %s30, 0
      %p245 = por %p243, %p244
      %p246 = scmp.ne.s32.totalorder %s234, %s235
      %p247 = scmp.eq.s32.totalorder %s31, 1
      %p248 = por %p246, %p247
      %p250 = scmp.ne.s32.totalorder %s235, %s249
      %p251 = scmp.eq.s32.totalorder %s31, 0
      %p252 = por %p250, %p251
      %s253 = ssub.s32 %s25, %s32
      %p254 = scmp.eq.s32.totalorder %s253, 0
      %s256 = sadd.s32 %s255, 1
      %s257 = scalar_select %p254, %s255, %s256
      %p260 = pneg %p254
      %p261 = scmp.eq.s32.totalorder %s25, 1
      %p262 = por %p260, %p261
      %p263 = scmp.ne.s32.totalorder %s255, %s258
      %p264 = scmp.eq.s32.totalorder %s25, 0
      %p265 = por %p263, %p264
      %p266 = scmp.ne.s32.totalorder %s255, %s258
      %p267 = scmp.eq.s32.totalorder %s30, 1
      %p268 = por %p266, %p267
      %p269 = scmp.ne.s32.totalorder %s258, %s259
      %p270 = scmp.eq.s32.totalorder %s30, 0
      %p271 = por %p269, %p270
      %p272 = scmp.ne.s32.totalorder %s258, %s259
      %p273 = scmp.eq.s32.totalorder %s31, 1
      %p274 = por %p272, %p273
      %p276 = scmp.ne.s32.totalorder %s259, %s275
      %p277 = scmp.eq.s32.totalorder %s31, 0
      %p278 = por %p276, %p277
      %p279 = scmp.le.s32.totalorder 1, %s25
      %p280 = scmp.lt.s32.totalorder %s25, 3
      %p281 = pnand %p279, %p280
      %p282 = pneg %p281
      // Predicated region
      $region9: #{tpu_custom_call.1} parent=5 // pred_check
        _
      $region10: #{tpu_custom_call.1} parent=5 // pred_check_branch
        %284 = sbr.rel (%p281) target = $region12
      $region11: #{tpu_custom_call.1} parent=5 // pred_region
        %s285 = ssub.s32 %s25, 1
        // Predicated region
        $region13: #{tpu_custom_call.1} parent=11 // pred_check
          %p286 = pneg %p98
        $region14: #{tpu_custom_call.1} parent=11 // pred_check_branch
          %288 = sbr.rel (%p286) target = $region16
        $region15: #{tpu_custom_call.1} parent=11 // pred_region
          %s290 = ssub.s32 128, 128
          %291 = vsyncadd [#allocation6], %s290
          %s293 = sshll.u32 [#allocation7], 4
          %s294 = int_to_ptr.vmem [resolvable:$true] %s293
          %296 = dma.hbm_to_vmem [thread:$0]  %s2, 128, %s294, [#allocation6]
        $region16: #{tpu_custom_call.1} parent=11 // pred_fallthru
          _
        // Predicated region
        $region17: #{tpu_custom_call.1} parent=11 // pred_check
          %p297 = pneg %p119
        $region18: #{tpu_custom_call.1} parent=11 // pred_check_branch
          %299 = sbr.rel (%p297) target = $region20
        $region19: #{tpu_custom_call.1} parent=11 // pred_region
          _
        $region20: #{tpu_custom_call.1} parent=11 // pred_fallthru
          _
        // Predicated region
        $region21: #{tpu_custom_call.1} parent=11 // pred_check
          %p300 = pneg %p140
        $region22: #{tpu_custom_call.1} parent=11 // pred_check_branch
          %302 = sbr.rel (%p300) target = $region24
        $region23: #{tpu_custom_call.1} parent=11 // pred_region
          _
        $region24: #{tpu_custom_call.1} parent=11 // pred_fallthru
          _
        // Predicated region
        $region25: #{tpu_custom_call.1} parent=11 // pred_check
          %p303 = pneg %p161
        $region26: #{tpu_custom_call.1} parent=11 // pred_check_branch
          %305 = sbr.rel (%p303) target = $region28
        $region27: #{tpu_custom_call.1} parent=11 // pred_region
          _
        $region28: #{tpu_custom_call.1} parent=11 // pred_fallthru
          _
        // Predicated region
        $region29: #{tpu_custom_call.1} parent=11 // pred_check
          %p306 = pneg %p182
        $region30: #{tpu_custom_call.1} parent=11 // pred_check_branch
          %308 = sbr.rel (%p306) target = $region32
        $region31: #{tpu_custom_call.1} parent=11 // pred_region
          _
        $region32: #{tpu_custom_call.1} parent=11 // pred_fallthru
          _
        // Predicated region
        $region33: #{tpu_custom_call.1} parent=11 // pred_check
          %p309 = pneg %p203
        $region34: #{tpu_custom_call.1} parent=11 // pred_check_branch
          %311 = sbr.rel (%p309) target = $region36
        $region35: #{tpu_custom_call.1} parent=11 // pred_region
          _
        $region36: #{tpu_custom_call.1} parent=11 // pred_fallthru
          _
        // Predicated region
        $region37: #{tpu_custom_call.1} parent=11 // pred_check
          %p312 = pneg %p224
        $region38: #{tpu_custom_call.1} parent=11 // pred_check_branch
          %314 = sbr.rel (%p312) target = $region40
        $region39: #{tpu_custom_call.1} parent=11 // pred_region
          _
        $region40: #{tpu_custom_call.1} parent=11 // pred_fallthru
          _
        // Predicated region
        $region41: #{tpu_custom_call.1} parent=11 // pred_check
          %p315 = pneg %p245
        $region42: #{tpu_custom_call.1} parent=11 // pred_check_branch
          %317 = sbr.rel (%p315) target = $region44
        $region43: #{tpu_custom_call.1} parent=11 // pred_region
          _
        $region44: #{tpu_custom_call.1} parent=11 // pred_fallthru
          _
      $region12: #{tpu_custom_call.1} parent=5 // pred_fallthru
        _
      %p318 = scmp.lt.s32.totalorder %s25, 2
      // Predicated region
      $region45: #{tpu_custom_call.1} parent=5 // pred_check
        %p319 = pneg %p318
      $region46: #{tpu_custom_call.1} parent=5 // pred_check_branch
        %321 = sbr.rel (%p319) target = $region48
      $region47: #{tpu_custom_call.1} parent=5 // pred_region
        // Predicated region
        $region49: #{tpu_custom_call.1} parent=47 // pred_check
          %p322 = pneg %p45
        $region50: #{tpu_custom_call.1} parent=47 // pred_check_branch
          %324 = sbr.rel (%p322) target = $region52
        $region51: #{tpu_custom_call.1} parent=47 // pred_region
          %s325 = sand.u32 %s35, 1
          %s326 = scalar_lea.sflag [#allocation3], %s325
          %s327 = sand.u32 %s35, 1
          %s328 = smul.addr %s327, 8
          %s329 = scalar_lea.vmem [#allocation2], %s328
          %s331 = ssub.s32 128, 128
          %332 = vsyncadd %s326, %s331
          %s333 = smul.addr %s25, 128
          %s334 = scalar_lea.hbm %s0, %s333
          %s336 = sshll.u32 %s329, 4
          %s337 = int_to_ptr.vmem [resolvable:$true] %s336
          %339 = dma.hbm_to_vmem [thread:$0]  %s334, 128, %s337, %s326
        $region52: #{tpu_custom_call.1} parent=47 // pred_fallthru
          _
        // Predicated region
        $region53: #{tpu_custom_call.1} parent=47 // pred_check
          %p340 = pneg %p71
        $region54: #{tpu_custom_call.1} parent=47 // pred_check_branch
          %342 = sbr.rel (%p340) target = $region56
        $region55: #{tpu_custom_call.1} parent=47 // pred_region
          %s343 = sand.u32 %s25, 1
          %s344 = scalar_lea.sflag [#allocation6], %s343
          %s345 = sand.u32 %s61, 1
          %s346 = scalar_lea.vmem [#allocation5], %s345
          %s348 = ssub.s32 16, 16
          %349 = vsyncadd %s344, %s348
          %s350 = smul.addr %s25, 16
          %s351 = scalar_lea.hbm %s1, %s350
          %s353 = sshll.u32 %s346, 4
          %s354 = int_to_ptr.vmem [resolvable:$true] %s353
          %356 = dma.hbm_to_vmem [thread:$0]  %s351, 16, %s354, %s344
        $region56: #{tpu_custom_call.1} parent=47 // pred_fallthru
          _
      $region48: #{tpu_custom_call.1} parent=5 // pred_fallthru
        _
      %p357 = scmp.le.s32.totalorder 1, %s25
      %p358 = scmp.lt.s32.totalorder %s25, 3
      %p359 = pnand %p357, %p358
      %p360 = pneg %p359
      // Predicated region
      $region57: #{tpu_custom_call.1} parent=5 // pred_check
        _
      $region58: #{tpu_custom_call.1} parent=5 // pred_check_branch
        %362 = sbr.rel (%p359) target = $region60
      $region59: #{tpu_custom_call.1} parent=5 // pred_region
        %s363 = ssub.s32 %s25, 1
        %s364 = sand.u32 %s38, 1
        %s365 = scalar_lea.sflag [#allocation3], %s364
        %s366 = sand.u32 %s38, 1
        %s367 = smul.addr %s366, 8
        %s368 = scalar_lea.vmem [#allocation2], %s367
        // Predicated region
        $region61: #{tpu_custom_call.1} parent=59 // pred_check
          %p369 = pneg %p51
        $region62: #{tpu_custom_call.1} parent=59 // pred_check_branch
          %371 = sbr.rel (%p369) target = $region64
        $region63: #{tpu_custom_call.1} parent=59 // pred_region
          %372 = dma.done %s365, 128
        $region64: #{tpu_custom_call.1} parent=59 // pred_fallthru
          _
        %s373 = sand.u32 %s30, 1
        %s374 = scalar_lea.sflag [#allocation6], %s373
        %s375 = sand.u32 %s64, 1
        %s376 = scalar_lea.vmem [#allocation5], %s375
        // Predicated region
        $region65: #{tpu_custom_call.1} parent=59 // pred_check
          %p377 = pneg %p77
        $region66: #{tpu_custom_call.1} parent=59 // pred_check_branch
          %379 = sbr.rel (%p377) target = $region68
        $region67: #{tpu_custom_call.1} parent=59 // pred_region
          %380 = dma.done %s374, 16
        $region68: #{tpu_custom_call.1} parent=59 // pred_fallthru
          _
        // Predicated region
        $region69: #{tpu_custom_call.1} parent=59 // pred_check
          %p381 = pneg %p98
        $region70: #{tpu_custom_call.1} parent=59 // pred_check_branch
          %383 = sbr.rel (%p381) target = $region72
        $region71: #{tpu_custom_call.1} parent=59 // pred_region
          %384 = dma.done [#allocation6], 128
        $region72: #{tpu_custom_call.1} parent=59 // pred_fallthru
          _
        %s385 = sand.u32 %s38, 1
        %s386 = scalar_lea.sflag [#allocation3], %s385
        %s387 = sand.u32 %s38, 1
        %s388 = smul.addr %s387, 8
        %s389 = scalar_lea.vmem [#allocation2], %s388
        %p390 = pneg %p51
        %p391 = pneg %p48
        %s392 = sand.u32 %s30, 1
        %s393 = scalar_lea.sflag [#allocation6], %s392
        %s394 = sand.u32 %s64, 1
        %s395 = scalar_lea.vmem [#allocation5], %s394
        %p396 = pneg %p77
        %p397 = pneg %p74
        %p398 = pneg %p98
        %p399 = pneg %p95
        %p400 = pneg %p119
        %p401 = pneg %p116
        %p402 = pneg %p140
        %p403 = pneg %p137
        %p404 = pneg %p161
        %p405 = pneg %p158
        %p406 = pneg %p182
        %p407 = pneg %p179
        %p408 = pneg %p203
        %p409 = pneg %p200
        %p410 = pneg %p224
        %p411 = pneg %p221
        %p412 = pneg %p245
        %p413 = pneg %p242
        %p414 = pneg %p271
        %p415 = pneg %p268
        %s416 = sand.u32 %s258, 1
        %s417 = scalar_lea.sflag [#allocation4], %s416
        %s418 = sand.u32 %s258, 1
        %s419 = smul.addr %s418, 8
        %s420 = scalar_lea.vmem [#allocation8], %s419
        %v421 = vld [vmem:[%s368] sm:$0xff]
        %v422 = vld [vmem:[%s376] sm:$0x1]
        %v423 = vld [vmem:[#allocation7] sm:$0xff]
        %v424 = vld [vmem:[%s9] sm:$0x3f]
        %v425 = vld [vmem:[%s3] sm:$0xff]
        %v426 = vld [vmem:[%s3 + $0x8] sm:$0xff]
        %v427 = vld [vmem:[%s3 + $0x10] sm:$0xff]
        %v428 = vld [vmem:[%s3 + $0x18] sm:$0xff]
        %v429 = vld [vmem:[%s4] sm:$0x1]
        %v431 = vlaneseq
        %v432 = vshrl.u32 %v431, 7
        %v433 = vsub.s32 0, %v432
        %v434 = vrot.slane %v429, %v433
        %vm436 = vcmask 261120
        %v438 = vsel %vm436, %v421, 0
        %440 = vmatprep.subr.mxu0 0.0
        %441 = vmatpush1.msra.mxu0 0.0
        %442 = vmatprep.subr.mxu0 0.0
        %443 = vmatpush1.msra.mxu0 0.0
        %444 = vmatprep.subr.mxu0 0.0
        %445 = vmatpush1.msra.mxu0 0.0
        %446 = vmatprep.subr.mxu0 0.0
        %447 = vmatpush1.msra.mxu0 0.0
        %448 = vmatprep.subr.mxu0 0.0
        %449 = vmatpush1.msra.mxu0 0.0
        %450 = vmatprep.subr.mxu0 0.0
        %451 = vmatpush1.msra.mxu0 0.0
        %452 = vmatprep.subr.mxu0 0.0
        %453 = vmatpush1.msra.mxu0 0.0
        %454 = vmatprep.subr.mxu0 0.0
        %455 = vmatpush1.msra.mxu0 0.0
        %456 = vmatprep.subr.mxu0 0.0
        %457 = vmatpush1.msra.mxu0 0.0
        %458 = vmatprep.subr.mxu0 0.0
        %459 = vmatpush1.msra.mxu0 0.0
        %460 = vmatprep.subr.mxu0 0.0
        %461 = vmatpush1.msra.mxu0 0.0
        %462 = vmatprep.subr.mxu0 0.0
        %463 = vmatpush1.msra.mxu0 0.0
        %464 = vmatprep.subr.mxu0 0.0
        %465 = vmatpush1.msra.mxu0 %v428
        %466 = vmatprep.subr.mxu0 0.0
        %467 = vmatpush1.msra.mxu0 %v427
        %468 = vmatprep.subr.mxu0 0.0
        %469 = vmatpush1.msra.mxu0 %v426
        %470 = vmatprep.subr.mxu0 0.0
        %471 = vmatpush1.msra.mxu0 %v425
        %472 = vmatprep.subr.mxu0 0.0
        %473 = vmatpush2.msra.mxu0 0.0
        %474 = vmatprep.subr.mxu0 0.0
        %475 = vmatpush2.msra.mxu0 0.0
        %476 = vmatprep.subr.mxu0 0.0
        %477 = vmatpush2.msra.mxu0 0.0
        %478 = vmatprep.subr.mxu0 0.0
        %479 = vmatpush2.msra.mxu0 0.0
        %480 = vmatprep.subr.mxu0 0.0
        %481 = vmatpush2.msra.mxu0 0.0
        %482 = vmatprep.subr.mxu0 0.0
        %483 = vmatpush2.msra.mxu0 0.0
        %484 = vmatprep.subr.mxu0 0.0
        %485 = vmatpush2.msra.mxu0 0.0
        %486 = vmatprep.subr.mxu0 0.0
        %487 = vmatpush2.msra.mxu0 0.0
        %488 = vmatprep.subr.mxu0 0.0
        %489 = vmatpush2.msra.mxu0 0.0
        %490 = vmatprep.subr.mxu0 0.0
        %491 = vmatpush2.msra.mxu0 0.0
        %492 = vmatprep.subr.mxu0 0.0
        %493 = vmatpush2.msra.mxu0 0.0
        %494 = vmatprep.subr.mxu0 0.0
        %495 = vmatpush2.msra.mxu0 0.0
        %496 = vmatprep.subr.mxu0 0.0
        %497 = vmatpush2.msra.mxu0 0.0
        %498 = vmatprep.subr.mxu0 0.0
        %499 = vmatpush2.msra.mxu0 0.0
        %500 = vmatprep.subr.mxu0 0.0
        %501 = vmatpush2.msra.mxu0 0.0
        %502 = vmatprep.subr.mxu0 0.0
        %503 = vmatpush2.msra.mxu0 0.0
        %504 = vmatprep.mubr.f32.mxu0 0.0
        %505 = vmatmul.mubr.f32.gmra.mxu0 %v438
        %v506 = vpop.f32.mrf.mxu0
        %v507 = vadd.f32 %v434, %v506
        %v508 = vpop.f32.mrf.mxu0
        %509 = vdwg.mxu0
        %511 = vrot.lane.b32.xlu0 %v507, 120
        %v512 = vpop.permute.xlu0 %511
        %513 = vrot.lane.b32.xlu0 %v507, 112
        %v514 = vpop.permute.xlu0 %513
        %515 = vrot.lane.b32.xlu0 %v507, 104
        %v516 = vpop.permute.xlu0 %515
        %517 = vrot.lane.b32.xlu0 %v507, 96
        %v518 = vpop.permute.xlu0 %517
        %vm519 = vcmask 64512
        %v520 = vsel %vm519, %v507, 0
        %v522 = vsel %vm519, %v518, 0
        %524 = vmatprep.subr.mxu0 0.0
        %525 = vmatpush1.xpose.msra.mxu0 0.0
        %526 = vmatprep.subr.mxu0 0.0
        %527 = vmatpush1.xpose.msra.mxu0 0.0
        %528 = vmatprep.subr.mxu0 0.0
        %529 = vmatpush1.xpose.msra.mxu0 0.0
        %530 = vmatprep.subr.mxu0 0.0
        %531 = vmatpush1.xpose.msra.mxu0 0.0
        %532 = vmatprep.subr.mxu0 0.0
        %533 = vmatpush1.xpose.msra.mxu0 0.0
        %534 = vmatprep.subr.mxu0 0.0
        %535 = vmatpush1.xpose.msra.mxu0 0.0
        %536 = vmatprep.subr.mxu0 0.0
        %537 = vmatpush1.xpose.msra.mxu0 0.0
        %538 = vmatprep.subr.mxu0 0.0
        %539 = vmatpush1.xpose.msra.mxu0 0.0
        %540 = vmatprep.subr.mxu0 0.0
        %541 = vmatpush1.xpose.msra.mxu0 0.0
        %542 = vmatprep.subr.mxu0 0.0
        %543 = vmatpush1.xpose.msra.mxu0 0.0
        %544 = vmatprep.subr.mxu0 0.0
        %545 = vmatpush1.xpose.msra.mxu0 0.0
        %546 = vmatprep.subr.mxu0 0.0
        %547 = vmatpush1.xpose.msra.mxu0 0.0
        %548 = vmatprep.subr.mxu0 0.0
        %549 = vmatpush1.xpose.msra.mxu0 0.0
        %550 = vmatprep.subr.mxu0 0.0
        %551 = vmatpush1.xpose.msra.mxu0 0.0
        %552 = vmatprep.subr.mxu0 0.0
        %553 = vmatpush1.xpose.msra.mxu0 0.0
        %554 = vmatprep.subr.mxu0 0.0
        %555 = vmatpush1.xpose.msra.mxu0 %v522
        %556 = vmatprep.subr.mxu0 0.0
        %557 = vmatpush2.xpose.msra.mxu0 0.0
        %558 = vmatprep.subr.mxu0 0.0
        %559 = vmatpush2.xpose.msra.mxu0 0.0
        %560 = vmatprep.subr.mxu0 0.0
        %561 = vmatpush2.xpose.msra.mxu0 0.0
        %562 = vmatprep.subr.mxu0 0.0
        %563 = vmatpush2.xpose.msra.mxu0 0.0
        %564 = vmatprep.subr.mxu0 0.0
        %565 = vmatpush2.xpose.msra.mxu0 0.0
        %566 = vmatprep.subr.mxu0 0.0
        %567 = vmatpush2.xpose.msra.mxu0 0.0
        %568 = vmatprep.subr.mxu0 0.0
        %569 = vmatpush2.xpose.msra.mxu0 0.0
        %570 = vmatprep.subr.mxu0 0.0
        %571 = vmatpush2.xpose.msra.mxu0 0.0
        %572 = vmatprep.subr.mxu0 0.0
        %573 = vmatpush2.xpose.msra.mxu0 0.0
        %574 = vmatprep.subr.mxu0 0.0
        %575 = vmatpush2.xpose.msra.mxu0 0.0
        %576 = vmatprep.subr.mxu0 0.0
        %577 = vmatpush2.xpose.msra.mxu0 0.0
        %578 = vmatprep.subr.mxu0 0.0
        %579 = vmatpush2.xpose.msra.mxu0 0.0
        %580 = vmatprep.subr.mxu0 0.0
        %581 = vmatpush2.xpose.msra.mxu0 0.0
        %582 = vmatprep.subr.mxu0 0.0
        %583 = vmatpush2.xpose.msra.mxu0 0.0
        %584 = vmatprep.subr.mxu0 0.0
        %585 = vmatpush2.xpose.msra.mxu0 0.0
        %586 = vmatprep.subr.mxu0 0.0
        %587 = vmatpush2.xpose.msra.mxu0 0.0
        %588 = vmatprep.mubr.f32.mxu0 0.0
        %589 = vmatmul.mubr.f32.gmra.mxu0 %v520
        %v590 = vpop.f32.mrf.mxu0
        %v591 = vadd.f32 %v423, %v590
        %v592 = vpop.f32.mrf.mxu0
        %593 = vdwg.mxu0
        %594 = vrot.lane.b32.xlu0 %v512, 96
        %v595 = vpop.permute.xlu0 %594
        %v596 = vsel %vm519, %v512, 0
        %v598 = vsel %vm519, %v595, 0
        %600 = vmatprep.subr.mxu0 0.0
        %601 = vmatpush1.xpose.msra.mxu0 0.0
        %602 = vmatprep.subr.mxu0 0.0
        %603 = vmatpush1.xpose.msra.mxu0 0.0
        %604 = vmatprep.subr.mxu0 0.0
        %605 = vmatpush1.xpose.msra.mxu0 0.0
        %606 = vmatprep.subr.mxu0 0.0
        %607 = vmatpush1.xpose.msra.mxu0 0.0
        %608 = vmatprep.subr.mxu0 0.0
        %609 = vmatpush1.xpose.msra.mxu0 0.0
        %610 = vmatprep.subr.mxu0 0.0
        %611 = vmatpush1.xpose.msra.mxu0 0.0
        %612 = vmatprep.subr.mxu0 0.0
        %613 = vmatpush1.xpose.msra.mxu0 0.0
        %614 = vmatprep.subr.mxu0 0.0
        %615 = vmatpush1.xpose.msra.mxu0 0.0
        %616 = vmatprep.subr.mxu0 0.0
        %617 = vmatpush1.xpose.msra.mxu0 0.0
        %618 = vmatprep.subr.mxu0 0.0
        %619 = vmatpush1.xpose.msra.mxu0 0.0
        %620 = vmatprep.subr.mxu0 0.0
        %621 = vmatpush1.xpose.msra.mxu0 0.0
        %622 = vmatprep.subr.mxu0 0.0
        %623 = vmatpush1.xpose.msra.mxu0 0.0
        %624 = vmatprep.subr.mxu0 0.0
        %625 = vmatpush1.xpose.msra.mxu0 0.0
        %626 = vmatprep.subr.mxu0 0.0
        %627 = vmatpush1.xpose.msra.mxu0 0.0
        %628 = vmatprep.subr.mxu0 0.0
        %629 = vmatpush1.xpose.msra.mxu0 0.0
        %630 = vmatprep.subr.mxu0 0.0
        %631 = vmatpush1.xpose.msra.mxu0 %v598
        %632 = vmatprep.subr.mxu0 0.0
        %633 = vmatpush2.xpose.msra.mxu0 0.0
        %634 = vmatprep.subr.mxu0 0.0
        %635 = vmatpush2.xpose.msra.mxu0 0.0
        %636 = vmatprep.subr.mxu0 0.0
        %637 = vmatpush2.xpose.msra.mxu0 0.0
        %638 = vmatprep.subr.mxu0 0.0
        %639 = vmatpush2.xpose.msra.mxu0 0.0
        %640 = vmatprep.subr.mxu0 0.0
        %641 = vmatpush2.xpose.msra.mxu0 0.0
        %642 = vmatprep.subr.mxu0 0.0
        %643 = vmatpush2.xpose.msra.mxu0 0.0
        %644 = vmatprep.subr.mxu0 0.0
        %645 = vmatpush2.xpose.msra.mxu0 0.0
        %646 = vmatprep.subr.mxu0 0.0
        %647 = vmatpush2.xpose.msra.mxu0 0.0
        %648 = vmatprep.subr.mxu0 0.0
        %649 = vmatpush2.xpose.msra.mxu0 0.0
        %650 = vmatprep.subr.mxu0 0.0
        %651 = vmatpush2.xpose.msra.mxu0 0.0
        %652 = vmatprep.subr.mxu0 0.0
        %653 = vmatpush2.xpose.msra.mxu0 0.0
        %654 = vmatprep.subr.mxu0 0.0
        %655 = vmatpush2.xpose.msra.mxu0 0.0
        %656 = vmatprep.subr.mxu0 0.0
        %657 = vmatpush2.xpose.msra.mxu0 0.0
        %658 = vmatprep.subr.mxu0 0.0
        %659 = vmatpush2.xpose.msra.mxu0 0.0
        %660 = vmatprep.subr.mxu0 0.0
        %661 = vmatpush2.xpose.msra.mxu0 0.0
        %662 = vmatprep.subr.mxu0 0.0
        %663 = vmatpush2.xpose.msra.mxu0 0.0
        %664 = vmatprep.mubr.f32.mxu0 0.0
        %665 = vmatmul.mubr.f32.gmra.mxu0 %v596
        %v666 = vpop.f32.mrf.mxu0
        %v667 = vadd.f32 %v423, %v666
        %v668 = vpop.f32.mrf.mxu0
        %669 = vdwg.mxu0
        %670 = vrot.lane.b32.xlu0 %v514, 96
        %v671 = vpop.permute.xlu0 %670
        %v672 = vsel %vm519, %v514, 0
        %v674 = vsel %vm519, %v671, 0
        %676 = vmatprep.subr.mxu0 0.0
        %677 = vmatpush1.xpose.msra.mxu0 0.0
        %678 = vmatprep.subr.mxu0 0.0
        %679 = vmatpush1.xpose.msra.mxu0 0.0
        %680 = vmatprep.subr.mxu0 0.0
        %681 = vmatpush1.xpose.msra.mxu0 0.0
        %682 = vmatprep.subr.mxu0 0.0
        %683 = vmatpush1.xpose.msra.mxu0 0.0
        %684 = vmatprep.subr.mxu0 0.0
        %685 = vmatpush1.xpose.msra.mxu0 0.0
        %686 = vmatprep.subr.mxu0 0.0
        %687 = vmatpush1.xpose.msra.mxu0 0.0
        %688 = vmatprep.subr.mxu0 0.0
        %689 = vmatpush1.xpose.msra.mxu0 0.0
        %690 = vmatprep.subr.mxu0 0.0
        %691 = vmatpush1.xpose.msra.mxu0 0.0
        %692 = vmatprep.subr.mxu0 0.0
        %693 = vmatpush1.xpose.msra.mxu0 0.0
        %694 = vmatprep.subr.mxu0 0.0
        %695 = vmatpush1.xpose.msra.mxu0 0.0
        %696 = vmatprep.subr.mxu0 0.0
        %697 = vmatpush1.xpose.msra.mxu0 0.0
        %698 = vmatprep.subr.mxu0 0.0
        %699 = vmatpush1.xpose.msra.mxu0 0.0
        %700 = vmatprep.subr.mxu0 0.0
        %701 = vmatpush1.xpose.msra.mxu0 0.0
        %702 = vmatprep.subr.mxu0 0.0
        %703 = vmatpush1.xpose.msra.mxu0 0.0
        %704 = vmatprep.subr.mxu0 0.0
        %705 = vmatpush1.xpose.msra.mxu0 0.0
        %706 = vmatprep.subr.mxu0 0.0
        %707 = vmatpush1.xpose.msra.mxu0 %v674
        %708 = vmatprep.subr.mxu0 0.0
        %709 = vmatpush2.xpose.msra.mxu0 0.0
        %710 = vmatprep.subr.mxu0 0.0
        %711 = vmatpush2.xpose.msra.mxu0 0.0
        %712 = vmatprep.subr.mxu0 0.0
        %713 = vmatpush2.xpose.msra.mxu0 0.0
        %714 = vmatprep.subr.mxu0 0.0
        %715 = vmatpush2.xpose.msra.mxu0 0.0
        %716 = vmatprep.subr.mxu0 0.0
        %717 = vmatpush2.xpose.msra.mxu0 0.0
        %718 = vmatprep.subr.mxu0 0.0
        %719 = vmatpush2.xpose.msra.mxu0 0.0
        %720 = vmatprep.subr.mxu0 0.0
        %721 = vmatpush2.xpose.msra.mxu0 0.0
        %722 = vmatprep.subr.mxu0 0.0
        %723 = vmatpush2.xpose.msra.mxu0 0.0
        %724 = vmatprep.subr.mxu0 0.0
        %725 = vmatpush2.xpose.msra.mxu0 0.0
        %726 = vmatprep.subr.mxu0 0.0
        %727 = vmatpush2.xpose.msra.mxu0 0.0
        %728 = vmatprep.subr.mxu0 0.0
        %729 = vmatpush2.xpose.msra.mxu0 0.0
        %730 = vmatprep.subr.mxu0 0.0
        %731 = vmatpush2.xpose.msra.mxu0 0.0
        %732 = vmatprep.subr.mxu0 0.0
        %733 = vmatpush2.xpose.msra.mxu0 0.0
        %734 = vmatprep.subr.mxu0 0.0
        %735 = vmatpush2.xpose.msra.mxu0 0.0
        %736 = vmatprep.subr.mxu0 0.0
        %737 = vmatpush2.xpose.msra.mxu0 0.0
        %738 = vmatprep.subr.mxu0 0.0
        %739 = vmatpush2.xpose.msra.mxu0 0.0
        %740 = vmatprep.mubr.f32.mxu0 0.0
        %741 = vmatmul.mubr.f32.gmra.mxu0 %v672
        %v742 = vpop.f32.mrf.mxu0
        %v743 = vadd.f32 %v423, %v742
        %v744 = vpop.f32.mrf.mxu0
        %745 = vdwg.mxu0
        %746 = vrot.lane.b32.xlu0 %v516, 96
        %v747 = vpop.permute.xlu0 %746
        %v748 = vsel %vm519, %v516, 0
        %v750 = vsel %vm519, %v747, 0
        %752 = vmatprep.subr.mxu0 0.0
        %753 = vmatpush1.xpose.msra.mxu0 0.0
        %754 = vmatprep.subr.mxu0 0.0
        %755 = vmatpush1.xpose.msra.mxu0 0.0
        %756 = vmatprep.subr.mxu0 0.0
        %757 = vmatpush1.xpose.msra.mxu0 0.0
        %758 = vmatprep.subr.mxu0 0.0
        %759 = vmatpush1.xpose.msra.mxu0 0.0
        %760 = vmatprep.subr.mxu0 0.0
        %761 = vmatpush1.xpose.msra.mxu0 0.0
        %762 = vmatprep.subr.mxu0 0.0
        %763 = vmatpush1.xpose.msra.mxu0 0.0
        %764 = vmatprep.subr.mxu0 0.0
        %765 = vmatpush1.xpose.msra.mxu0 0.0
        %766 = vmatprep.subr.mxu0 0.0
        %767 = vmatpush1.xpose.msra.mxu0 0.0
        %768 = vmatprep.subr.mxu0 0.0
        %769 = vmatpush1.xpose.msra.mxu0 0.0
        %770 = vmatprep.subr.mxu0 0.0
        %771 = vmatpush1.xpose.msra.mxu0 0.0
        %772 = vmatprep.subr.mxu0 0.0
        %773 = vmatpush1.xpose.msra.mxu0 0.0
        %774 = vmatprep.subr.mxu0 0.0
        %775 = vmatpush1.xpose.msra.mxu0 0.0
        %776 = vmatprep.subr.mxu0 0.0
        %777 = vmatpush1.xpose.msra.mxu0 0.0
        %778 = vmatprep.subr.mxu0 0.0
        %779 = vmatpush1.xpose.msra.mxu0 0.0
        %780 = vmatprep.subr.mxu0 0.0
        %781 = vmatpush1.xpose.msra.mxu0 0.0
        %782 = vmatprep.subr.mxu0 0.0
        %783 = vmatpush1.xpose.msra.mxu0 %v750
        %784 = vmatprep.subr.mxu0 0.0
        %785 = vmatpush2.xpose.msra.mxu0 0.0
        %786 = vmatprep.subr.mxu0 0.0
        %787 = vmatpush2.xpose.msra.mxu0 0.0
        %788 = vmatprep.subr.mxu0 0.0
        %789 = vmatpush2.xpose.msra.mxu0 0.0
        %790 = vmatprep.subr.mxu0 0.0
        %791 = vmatpush2.xpose.msra.mxu0 0.0
        %792 = vmatprep.subr.mxu0 0.0
        %793 = vmatpush2.xpose.msra.mxu0 0.0
        %794 = vmatprep.subr.mxu0 0.0
        %795 = vmatpush2.xpose.msra.mxu0 0.0
        %796 = vmatprep.subr.mxu0 0.0
        %797 = vmatpush2.xpose.msra.mxu0 0.0
        %798 = vmatprep.subr.mxu0 0.0
        %799 = vmatpush2.xpose.msra.mxu0 0.0
        %800 = vmatprep.subr.mxu0 0.0
        %801 = vmatpush2.xpose.msra.mxu0 0.0
        %802 = vmatprep.subr.mxu0 0.0
        %803 = vmatpush2.xpose.msra.mxu0 0.0
        %804 = vmatprep.subr.mxu0 0.0
        %805 = vmatpush2.xpose.msra.mxu0 0.0
        %806 = vmatprep.subr.mxu0 0.0
        %807 = vmatpush2.xpose.msra.mxu0 0.0
        %808 = vmatprep.subr.mxu0 0.0
        %809 = vmatpush2.xpose.msra.mxu0 0.0
        %810 = vmatprep.subr.mxu0 0.0
        %811 = vmatpush2.xpose.msra.mxu0 0.0
        %812 = vmatprep.subr.mxu0 0.0
        %813 = vmatpush2.xpose.msra.mxu0 0.0
        %814 = vmatprep.subr.mxu0 0.0
        %815 = vmatpush2.xpose.msra.mxu0 0.0
        %816 = vmatprep.mubr.f32.mxu0 0.0
        %817 = vmatmul.mubr.f32.gmra.mxu0 %v748
        %v818 = vpop.f32.mrf.mxu0
        %v819 = vadd.f32 %v423, %v818
        %v820 = vpop.f32.mrf.mxu0
        %821 = vdwg.mxu0
        %v823 = vlaneseq
        %v824 = vshrl.u32 %v823, 7
        %v825 = vsub.s32 0, %v824
        %v826 = vrot.slane %v422, %v825
        %v828 = vadd.f32 %v591, %v826
        %v829 = vadd.f32 %v667, %v826
        %v830 = vadd.f32 %v743, %v826
        %v831 = vadd.f32 %v819, %v826
        %v832 = vsel %vm519, %v828, -inf
        %833 = vmax.xlane.f32.xlu0 %v832
        %v834 = vpop.xlane.xlu0 %833
        %v835 = vsel %vm519, %v829, -inf
        %836 = vmax.xlane.f32.xlu0 %v835
        %v837 = vpop.xlane.xlu0 %836
        %v838 = vsel %vm519, %v830, -inf
        %839 = vmax.xlane.f32.xlu0 %v838
        %v840 = vpop.xlane.xlu0 %839
        %v841 = vsel %vm519, %v831, -inf
        %842 = vmax.xlane.f32.xlu0 %v841
        %v843 = vpop.xlane.xlu0 %842
        %v844 = vsub.f32 %v828, %v834
        %v845 = vsub.f32 %v829, %v837
        %v846 = vsub.f32 %v830, %v840
        %v847 = vsub.f32 %v831, %v843
        %v848 = vmul.f32 %v844, 1.442695
        %v849 = vpow.pop %v848
        %v850 = vmul.f32 %v845, 1.442695
        %v851 = vpow.pop %v850
        %v852 = vmul.f32 %v846, 1.442695
        %v853 = vpow.pop %v852
        %v854 = vmul.f32 %v847, 1.442695
        %v855 = vpow.pop %v854
        %v856 = vsel %vm519, %v849, 0.0
        %857 = vadd.xlane.f32.xlu0 %v856
        %v858 = vpop.xlane.xlu0 %857
        %v859 = vsel %vm519, %v851, 0.0
        %860 = vadd.xlane.f32.xlu0 %v859
        %v861 = vpop.xlane.xlu0 %860
        %v862 = vsel %vm519, %v853, 0.0
        %863 = vadd.xlane.f32.xlu0 %v862
        %v864 = vpop.xlane.xlu0 %863
        %v865 = vsel %vm519, %v855, 0.0
        %866 = vadd.xlane.f32.xlu0 %v865
        %v867 = vpop.xlane.xlu0 %866
        %868 = vrot.lane.b32.xlu0 %v507, 64
        %v869 = vpop.permute.xlu0 %868
        %v872 = vsel %vm519, %v849, 0
        %874 = vmatprep.subr.mxu0 0.0
        %875 = vmatpush1.msra.mxu0 0.0
        %876 = vmatprep.subr.mxu0 0.0
        %877 = vmatpush1.msra.mxu0 0.0
        %878 = vmatprep.subr.mxu0 0.0
        %879 = vmatpush1.msra.mxu0 0.0
        %880 = vmatprep.subr.mxu0 0.0
        %881 = vmatpush1.msra.mxu0 0.0
        %882 = vmatprep.subr.mxu0 0.0
        %883 = vmatpush1.msra.mxu0 0.0
        %884 = vmatprep.subr.mxu0 0.0
        %885 = vmatpush1.msra.mxu0 0.0
        %886 = vmatprep.subr.mxu0 0.0
        %887 = vmatpush1.msra.mxu0 0.0
        %888 = vmatprep.subr.mxu0 0.0
        %889 = vmatpush1.msra.mxu0 0.0
        %890 = vmatprep.subr.mxu0 0.0
        %891 = vmatpush1.msra.mxu0 0.0
        %892 = vmatprep.subr.mxu0 0.0
        %893 = vmatpush1.msra.mxu0 0.0
        %894 = vmatprep.subr.mxu0 0.0
        %895 = vmatpush1.msra.mxu0 0.0
        %896 = vmatprep.subr.mxu0 0.0
        %897 = vmatpush1.msra.mxu0 0.0
        %898 = vmatprep.subr.mxu0 0.0
        %899 = vmatpush1.msra.mxu0 0.0
        %900 = vmatprep.subr.mxu0 0.0
        %901 = vmatpush1.msra.mxu0 0.0
        %902 = vmatprep.subr.mxu0 0.0
        %903 = vmatpush1.msra.mxu0 0.0
        %904 = vmatprep.subr.mxu0 0.0
        %905 = vmatpush1.msra.mxu0 %v869
        %906 = vmatprep.subr.mxu0 0.0
        %907 = vmatpush2.msra.mxu0 0.0
        %908 = vmatprep.subr.mxu0 0.0
        %909 = vmatpush2.msra.mxu0 0.0
        %910 = vmatprep.subr.mxu0 0.0
        %911 = vmatpush2.msra.mxu0 0.0
        %912 = vmatprep.subr.mxu0 0.0
        %913 = vmatpush2.msra.mxu0 0.0
        %914 = vmatprep.subr.mxu0 0.0
        %915 = vmatpush2.msra.mxu0 0.0
        %916 = vmatprep.subr.mxu0 0.0
        %917 = vmatpush2.msra.mxu0 0.0
        %918 = vmatprep.subr.mxu0 0.0
        %919 = vmatpush2.msra.mxu0 0.0
        %920 = vmatprep.subr.mxu0 0.0
        %921 = vmatpush2.msra.mxu0 0.0
        %922 = vmatprep.subr.mxu0 0.0
        %923 = vmatpush2.msra.mxu0 0.0
        %924 = vmatprep.subr.mxu0 0.0
        %925 = vmatpush2.msra.mxu0 0.0
        %926 = vmatprep.subr.mxu0 0.0
        %927 = vmatpush2.msra.mxu0 0.0
        %928 = vmatprep.subr.mxu0 0.0
        %929 = vmatpush2.msra.mxu0 0.0
        %930 = vmatprep.subr.mxu0 0.0
        %931 = vmatpush2.msra.mxu0 0.0
        %932 = vmatprep.subr.mxu0 0.0
        %933 = vmatpush2.msra.mxu0 0.0
        %934 = vmatprep.subr.mxu0 0.0
        %935 = vmatpush2.msra.mxu0 0.0
        %936 = vmatprep.subr.mxu0 0.0
        %937 = vmatpush2.msra.mxu0 0.0
        %938 = vmatprep.mubr.f32.mxu0 0.0
        %939 = vmatmul.mubr.f32.gmra.mxu0 %v872
        %v940 = vpop.f32.mrf.mxu0
        %v941 = vadd.f32 0.0, %v940
        %v942 = vpop.f32.mrf.mxu0
        %943 = vdwg.mxu0
        %944 = vrot.lane.b32.xlu0 %v512, 64
        %v945 = vpop.permute.xlu0 %944
        %v948 = vsel %vm519, %v851, 0
        %950 = vmatprep.subr.mxu0 0.0
        %951 = vmatpush1.msra.mxu0 0.0
        %952 = vmatprep.subr.mxu0 0.0
        %953 = vmatpush1.msra.mxu0 0.0
        %954 = vmatprep.subr.mxu0 0.0
        %955 = vmatpush1.msra.mxu0 0.0
        %956 = vmatprep.subr.mxu0 0.0
        %957 = vmatpush1.msra.mxu0 0.0
        %958 = vmatprep.subr.mxu0 0.0
        %959 = vmatpush1.msra.mxu0 0.0
        %960 = vmatprep.subr.mxu0 0.0
        %961 = vmatpush1.msra.mxu0 0.0
        %962 = vmatprep.subr.mxu0 0.0
        %963 = vmatpush1.msra.mxu0 0.0
        %964 = vmatprep.subr.mxu0 0.0
        %965 = vmatpush1.msra.mxu0 0.0
        %966 = vmatprep.subr.mxu0 0.0
        %967 = vmatpush1.msra.mxu0 0.0
        %968 = vmatprep.subr.mxu0 0.0
        %969 = vmatpush1.msra.mxu0 0.0
        %970 = vmatprep.subr.mxu0 0.0
        %971 = vmatpush1.msra.mxu0 0.0
        %972 = vmatprep.subr.mxu0 0.0
        %973 = vmatpush1.msra.mxu0 0.0
        %974 = vmatprep.subr.mxu0 0.0
        %975 = vmatpush1.msra.mxu0 0.0
        %976 = vmatprep.subr.mxu0 0.0
        %977 = vmatpush1.msra.mxu0 0.0
        %978 = vmatprep.subr.mxu0 0.0
        %979 = vmatpush1.msra.mxu0 0.0
        %980 = vmatprep.subr.mxu0 0.0
        %981 = vmatpush1.msra.mxu0 %v945
        %982 = vmatprep.subr.mxu0 0.0
        %983 = vmatpush2.msra.mxu0 0.0
        %984 = vmatprep.subr.mxu0 0.0
        %985 = vmatpush2.msra.mxu0 0.0
        %986 = vmatprep.subr.mxu0 0.0
        %987 = vmatpush2.msra.mxu0 0.0
        %988 = vmatprep.subr.mxu0 0.0
        %989 = vmatpush2.msra.mxu0 0.0
        %990 = vmatprep.subr.mxu0 0.0
        %991 = vmatpush2.msra.mxu0 0.0
        %992 = vmatprep.subr.mxu0 0.0
        %993 = vmatpush2.msra.mxu0 0.0
        %994 = vmatprep.subr.mxu0 0.0
        %995 = vmatpush2.msra.mxu0 0.0
        %996 = vmatprep.subr.mxu0 0.0
        %997 = vmatpush2.msra.mxu0 0.0
        %998 = vmatprep.subr.mxu0 0.0
        %999 = vmatpush2.msra.mxu0 0.0
        %1000 = vmatprep.subr.mxu0 0.0
        %1001 = vmatpush2.msra.mxu0 0.0
        %1002 = vmatprep.subr.mxu0 0.0
        %1003 = vmatpush2.msra.mxu0 0.0
        %1004 = vmatprep.subr.mxu0 0.0
        %1005 = vmatpush2.msra.mxu0 0.0
        %1006 = vmatprep.subr.mxu0 0.0
        %1007 = vmatpush2.msra.mxu0 0.0
        %1008 = vmatprep.subr.mxu0 0.0
        %1009 = vmatpush2.msra.mxu0 0.0
        %1010 = vmatprep.subr.mxu0 0.0
        %1011 = vmatpush2.msra.mxu0 0.0
        %1012 = vmatprep.subr.mxu0 0.0
        %1013 = vmatpush2.msra.mxu0 0.0
        %1014 = vmatprep.mubr.f32.mxu0 0.0
        %1015 = vmatmul.mubr.f32.gmra.mxu0 %v948
        %v1016 = vpop.f32.mrf.mxu0
        %v1017 = vadd.f32 0.0, %v1016
        %v1018 = vpop.f32.mrf.mxu0
        %1019 = vdwg.mxu0
        %1020 = vrot.lane.b32.xlu0 %v514, 64
        %v1021 = vpop.permute.xlu0 %1020
        %v1024 = vsel %vm519, %v853, 0
        %1026 = vmatprep.subr.mxu0 0.0
        %1027 = vmatpush1.msra.mxu0 0.0
        %1028 = vmatprep.subr.mxu0 0.0
        %1029 = vmatpush1.msra.mxu0 0.0
        %1030 = vmatprep.subr.mxu0 0.0
        %1031 = vmatpush1.msra.mxu0 0.0
        %1032 = vmatprep.subr.mxu0 0.0
        %1033 = vmatpush1.msra.mxu0 0.0
        %1034 = vmatprep.subr.mxu0 0.0
        %1035 = vmatpush1.msra.mxu0 0.0
        %1036 = vmatprep.subr.mxu0 0.0
        %1037 = vmatpush1.msra.mxu0 0.0
        %1038 = vmatprep.subr.mxu0 0.0
        %1039 = vmatpush1.msra.mxu0 0.0
        %1040 = vmatprep.subr.mxu0 0.0
        %1041 = vmatpush1.msra.mxu0 0.0
        %1042 = vmatprep.subr.mxu0 0.0
        %1043 = vmatpush1.msra.mxu0 0.0
        %1044 = vmatprep.subr.mxu0 0.0
        %1045 = vmatpush1.msra.mxu0 0.0
        %1046 = vmatprep.subr.mxu0 0.0
        %1047 = vmatpush1.msra.mxu0 0.0
        %1048 = vmatprep.subr.mxu0 0.0
        %1049 = vmatpush1.msra.mxu0 0.0
        %1050 = vmatprep.subr.mxu0 0.0
        %1051 = vmatpush1.msra.mxu0 0.0
        %1052 = vmatprep.subr.mxu0 0.0
        %1053 = vmatpush1.msra.mxu0 0.0
        %1054 = vmatprep.subr.mxu0 0.0
        %1055 = vmatpush1.msra.mxu0 0.0
        %1056 = vmatprep.subr.mxu0 0.0
        %1057 = vmatpush1.msra.mxu0 %v1021
        %1058 = vmatprep.subr.mxu0 0.0
        %1059 = vmatpush2.msra.mxu0 0.0
        %1060 = vmatprep.subr.mxu0 0.0
        %1061 = vmatpush2.msra.mxu0 0.0
        %1062 = vmatprep.subr.mxu0 0.0
        %1063 = vmatpush2.msra.mxu0 0.0
        %1064 = vmatprep.subr.mxu0 0.0
        %1065 = vmatpush2.msra.mxu0 0.0
        %1066 = vmatprep.subr.mxu0 0.0
        %1067 = vmatpush2.msra.mxu0 0.0
        %1068 = vmatprep.subr.mxu0 0.0
        %1069 = vmatpush2.msra.mxu0 0.0
        %1070 = vmatprep.subr.mxu0 0.0
        %1071 = vmatpush2.msra.mxu0 0.0
        %1072 = vmatprep.subr.mxu0 0.0
        %1073 = vmatpush2.msra.mxu0 0.0
        %1074 = vmatprep.subr.mxu0 0.0
        %1075 = vmatpush2.msra.mxu0 0.0
        %1076 = vmatprep.subr.mxu0 0.0
        %1077 = vmatpush2.msra.mxu0 0.0
        %1078 = vmatprep.subr.mxu0 0.0
        %1079 = vmatpush2.msra.mxu0 0.0
        %1080 = vmatprep.subr.mxu0 0.0
        %1081 = vmatpush2.msra.mxu0 0.0
        %1082 = vmatprep.subr.mxu0 0.0
        %1083 = vmatpush2.msra.mxu0 0.0
        %1084 = vmatprep.subr.mxu0 0.0
        %1085 = vmatpush2.msra.mxu0 0.0
        %1086 = vmatprep.subr.mxu0 0.0
        %1087 = vmatpush2.msra.mxu0 0.0
        %1088 = vmatprep.subr.mxu0 0.0
        %1089 = vmatpush2.msra.mxu0 0.0
        %1090 = vmatprep.mubr.f32.mxu0 0.0
        %1091 = vmatmul.mubr.f32.gmra.mxu0 %v1024
        %v1092 = vpop.f32.mrf.mxu0
        %v1093 = vadd.f32 0.0, %v1092
        %v1094 = vpop.f32.mrf.mxu0
        %1095 = vdwg.mxu0
        %1096 = vrot.lane.b32.xlu0 %v516, 64
        %v1097 = vpop.permute.xlu0 %1096
        %v1100 = vsel %vm519, %v855, 0
        %1102 = vmatprep.subr.mxu0 0.0
        %1103 = vmatpush1.msra.mxu0 0.0
        %1104 = vmatprep.subr.mxu0 0.0
        %1105 = vmatpush1.msra.mxu0 0.0
        %1106 = vmatprep.subr.mxu0 0.0
        %1107 = vmatpush1.msra.mxu0 0.0
        %1108 = vmatprep.subr.mxu0 0.0
        %1109 = vmatpush1.msra.mxu0 0.0
        %1110 = vmatprep.subr.mxu0 0.0
        %1111 = vmatpush1.msra.mxu0 0.0
        %1112 = vmatprep.subr.mxu0 0.0
        %1113 = vmatpush1.msra.mxu0 0.0
        %1114 = vmatprep.subr.mxu0 0.0
        %1115 = vmatpush1.msra.mxu0 0.0
        %1116 = vmatprep.subr.mxu0 0.0
        %1117 = vmatpush1.msra.mxu0 0.0
        %1118 = vmatprep.subr.mxu0 0.0
        %1119 = vmatpush1.msra.mxu0 0.0
        %1120 = vmatprep.subr.mxu0 0.0
        %1121 = vmatpush1.msra.mxu0 0.0
        %1122 = vmatprep.subr.mxu0 0.0
        %1123 = vmatpush1.msra.mxu0 0.0
        %1124 = vmatprep.subr.mxu0 0.0
        %1125 = vmatpush1.msra.mxu0 0.0
        %1126 = vmatprep.subr.mxu0 0.0
        %1127 = vmatpush1.msra.mxu0 0.0
        %1128 = vmatprep.subr.mxu0 0.0
        %1129 = vmatpush1.msra.mxu0 0.0
        %1130 = vmatprep.subr.mxu0 0.0
        %1131 = vmatpush1.msra.mxu0 0.0
        %1132 = vmatprep.subr.mxu0 0.0
        %1133 = vmatpush1.msra.mxu0 %v1097
        %1134 = vmatprep.subr.mxu0 0.0
        %1135 = vmatpush2.msra.mxu0 0.0
        %1136 = vmatprep.subr.mxu0 0.0
        %1137 = vmatpush2.msra.mxu0 0.0
        %1138 = vmatprep.subr.mxu0 0.0
        %1139 = vmatpush2.msra.mxu0 0.0
        %1140 = vmatprep.subr.mxu0 0.0
        %1141 = vmatpush2.msra.mxu0 0.0
        %1142 = vmatprep.subr.mxu0 0.0
        %1143 = vmatpush2.msra.mxu0 0.0
        %1144 = vmatprep.subr.mxu0 0.0
        %1145 = vmatpush2.msra.mxu0 0.0
        %1146 = vmatprep.subr.mxu0 0.0
        %1147 = vmatpush2.msra.mxu0 0.0
        %1148 = vmatprep.subr.mxu0 0.0
        %1149 = vmatpush2.msra.mxu0 0.0
        %1150 = vmatprep.subr.mxu0 0.0
        %1151 = vmatpush2.msra.mxu0 0.0
        %1152 = vmatprep.subr.mxu0 0.0
        %1153 = vmatpush2.msra.mxu0 0.0
        %1154 = vmatprep.subr.mxu0 0.0
        %1155 = vmatpush2.msra.mxu0 0.0
        %1156 = vmatprep.subr.mxu0 0.0
        %1157 = vmatpush2.msra.mxu0 0.0
        %1158 = vmatprep.subr.mxu0 0.0
        %1159 = vmatpush2.msra.mxu0 0.0
        %1160 = vmatprep.subr.mxu0 0.0
        %1161 = vmatpush2.msra.mxu0 0.0
        %1162 = vmatprep.subr.mxu0 0.0
        %1163 = vmatpush2.msra.mxu0 0.0
        %1164 = vmatprep.subr.mxu0 0.0
        %1165 = vmatpush2.msra.mxu0 0.0
        %1166 = vmatprep.mubr.f32.mxu0 0.0
        %1167 = vmatmul.mubr.f32.gmra.mxu0 %v1100
        %v1168 = vpop.f32.mrf.mxu0
        %v1169 = vadd.f32 0.0, %v1168
        %v1170 = vpop.f32.mrf.mxu0
        %1171 = vdwg.mxu0
        %v1172 = vrcp.pop %v858
        %v1173 = vrcp.pop %v861
        %v1174 = vrcp.pop %v864
        %v1175 = vrcp.pop %v867
        %v1176 = vmul.f32 %v941, %v1172
        %v1177 = vmul.f32 %v1017, %v1173
        %v1178 = vmul.f32 %v1093, %v1174
        %v1179 = vmul.f32 %v1169, %v1175
        %1181 = vrot.lane.b32.xlu0 %v1177, 8
        %v1182 = vpop.permute.xlu0 %1181
        %1185 = vrot.lane.b32.xlu0 %v1178, 16
        %v1186 = vpop.permute.xlu0 %1185
        %1189 = vrot.lane.b32.xlu0 %v1179, 24
        %v1190 = vpop.permute.xlu0 %1189
        %v1192 = vsel %vm519, %v1176, %v1182
        %vm1193 = vcmask 130048
        %v1194 = vsel %vm1193, %v1192, %v1186
        %vm1195 = vcmask 195584
        %v1196 = vsel %vm1195, %v1194, %v1190
        %v1197 = vld [vmem:[%s5] sm:$0xff]
        %v1198 = vld [vmem:[%s5 + $0x8] sm:$0xff]
        %v1199 = vld [vmem:[%s5 + $0x10] sm:$0xff]
        %v1200 = vld [vmem:[%s5 + $0x18] sm:$0xff]
        %v1201 = vlaneseq
        %v1202 = vshrl.u32 %v1201, 7
        %v1203 = vsub.s32 0, %v1202
        %v1204 = vrot.slane %v424, %v1203
        %v1206 = vsel %vm436, %v1196, 0
        %1208 = vmatprep.subr.mxu0 0.0
        %1209 = vmatpush1.msra.mxu0 0.0
        %1210 = vmatprep.subr.mxu0 0.0
        %1211 = vmatpush1.msra.mxu0 0.0
        %1212 = vmatprep.subr.mxu0 0.0
        %1213 = vmatpush1.msra.mxu0 0.0
        %1214 = vmatprep.subr.mxu0 0.0
        %1215 = vmatpush1.msra.mxu0 0.0
        %1216 = vmatprep.subr.mxu0 0.0
        %1217 = vmatpush1.msra.mxu0 0.0
        %1218 = vmatprep.subr.mxu0 0.0
        %1219 = vmatpush1.msra.mxu0 0.0
        %1220 = vmatprep.subr.mxu0 0.0
        %1221 = vmatpush1.msra.mxu0 0.0
        %1222 = vmatprep.subr.mxu0 0.0
        %1223 = vmatpush1.msra.mxu0 0.0
        %1224 = vmatprep.subr.mxu0 0.0
        %1225 = vmatpush1.msra.mxu0 0.0
        %1226 = vmatprep.subr.mxu0 0.0
        %1227 = vmatpush1.msra.mxu0 0.0
        %1228 = vmatprep.subr.mxu0 0.0
        %1229 = vmatpush1.msra.mxu0 0.0
        %1230 = vmatprep.subr.mxu0 0.0
        %1231 = vmatpush1.msra.mxu0 0.0
        %1232 = vmatprep.subr.mxu0 0.0
        %1233 = vmatpush1.msra.mxu0 %v1200
        %1234 = vmatprep.subr.mxu0 0.0
        %1235 = vmatpush1.msra.mxu0 %v1199
        %1236 = vmatprep.subr.mxu0 0.0
        %1237 = vmatpush1.msra.mxu0 %v1198
        %1238 = vmatprep.subr.mxu0 0.0
        %1239 = vmatpush1.msra.mxu0 %v1197
        %1240 = vmatprep.subr.mxu0 0.0
        %1241 = vmatpush2.msra.mxu0 0.0
        %1242 = vmatprep.subr.mxu0 0.0
        %1243 = vmatpush2.msra.mxu0 0.0
        %1244 = vmatprep.subr.mxu0 0.0
        %1245 = vmatpush2.msra.mxu0 0.0
        %1246 = vmatprep.subr.mxu0 0.0
        %1247 = vmatpush2.msra.mxu0 0.0
        %1248 = vmatprep.subr.mxu0 0.0
        %1249 = vmatpush2.msra.mxu0 0.0
        %1250 = vmatprep.subr.mxu0 0.0
        %1251 = vmatpush2.msra.mxu0 0.0
        %1252 = vmatprep.subr.mxu0 0.0
        %1253 = vmatpush2.msra.mxu0 0.0
        %1254 = vmatprep.subr.mxu0 0.0
        %1255 = vmatpush2.msra.mxu0 0.0
        %1256 = vmatprep.subr.mxu0 0.0
        %1257 = vmatpush2.msra.mxu0 0.0
        %1258 = vmatprep.subr.mxu0 0.0
        %1259 = vmatpush2.msra.mxu0 0.0
        %1260 = vmatprep.subr.mxu0 0.0
        %1261 = vmatpush2.msra.mxu0 0.0
        %1262 = vmatprep.subr.mxu0 0.0
        %1263 = vmatpush2.msra.mxu0 0.0
        %1264 = vmatprep.subr.mxu0 0.0
        %1265 = vmatpush2.msra.mxu0 0.0
        %1266 = vmatprep.subr.mxu0 0.0
        %1267 = vmatpush2.msra.mxu0 0.0
        %1268 = vmatprep.subr.mxu0 0.0
        %1269 = vmatpush2.msra.mxu0 0.0
        %1270 = vmatprep.subr.mxu0 0.0
        %1271 = vmatpush2.msra.mxu0 0.0
        %1272 = vmatprep.mubr.f32.mxu0 0.0
        %1273 = vmatmul.mubr.f32.gmra.mxu0 %v1206
        %v1274 = vpop.f32.mrf.mxu0
        %v1275 = vadd.f32 %v1204, %v1274
        %v1276 = vpop.f32.mrf.mxu0
        %1277 = vdwg.mxu0
        %v1278 = vadd.f32 %v421, %v1275
        %v1279 = vsel %vm436, %v1278, 0.0
        %1280 = vadd.xlane.f32.xlu0 %v1279
        %v1281 = vpop.xlane.xlu0 %1280
        %v1282 = vrcp.pop 32.0
        %v1283 = vmul.f32 %v1281, %v1282
        %v1284 = vsub.f32 %v1278, %v1283
        %v1285 = vmul.f32 %v1284, %v1284
        %v1286 = vsel %vm436, %v1285, 0.0
        %1287 = vadd.xlane.f32.xlu0 %v1286
        %v1288 = vpop.xlane.xlu0 %1287
        %v1289 = vmul.f32 %v1288, %v1282
        %v1290 = vadd.f32 %v1289, 1e-05
        %v1291 = vrsqrt.pop %v1290
        %v1292 = vmul.f32 %v1284, %v1291
        %v1293 = vlaneseq
        %v1294 = vshrl.u32 %v1293, 7
        %v1295 = vsub.s32 1, %v1294
        %v1296 = vrot.slane %v424, %v1295
        %v1297 = vmul.f32 %v1292, %v1296
        %v1298 = vlaneseq
        %v1299 = vshrl.u32 %v1298, 7
        %v1300 = vsub.s32 2, %v1299
        %v1301 = vrot.slane %v424, %v1300
        %v1302 = vadd.f32 %v1297, %v1301
        %v1303 = vld [vmem:[%s6] sm:$0xff]
        %v1304 = vld [vmem:[%s6 + $0x8] sm:$0xff]
        %v1305 = vld [vmem:[%s6 + $0x10] sm:$0xff]
        %v1306 = vld [vmem:[%s6 + $0x18] sm:$0xff]
        %v1307 = vld [vmem:[%s7] sm:$0x1]
        %v1309 = vlaneseq
        %v1310 = vshrl.u32 %v1309, 7
        %v1311 = vsub.s32 0, %v1310
        %v1312 = vrot.slane %v1307, %v1311
        %v1315 = vsel %vm436, %v1302, 0
        %1317 = vmatprep.subr.mxu0 0.0
        %1318 = vmatpush1.msra.mxu0 0.0
        %1319 = vmatprep.subr.mxu0 0.0
        %1320 = vmatpush1.msra.mxu0 0.0
        %1321 = vmatprep.subr.mxu0 0.0
        %1322 = vmatpush1.msra.mxu0 0.0
        %1323 = vmatprep.subr.mxu0 0.0
        %1324 = vmatpush1.msra.mxu0 0.0
        %1325 = vmatprep.subr.mxu0 0.0
        %1326 = vmatpush1.msra.mxu0 0.0
        %1327 = vmatprep.subr.mxu0 0.0
        %1328 = vmatpush1.msra.mxu0 0.0
        %1329 = vmatprep.subr.mxu0 0.0
        %1330 = vmatpush1.msra.mxu0 0.0
        %1331 = vmatprep.subr.mxu0 0.0
        %1332 = vmatpush1.msra.mxu0 0.0
        %1333 = vmatprep.subr.mxu0 0.0
        %1334 = vmatpush1.msra.mxu0 0.0
        %1335 = vmatprep.subr.mxu0 0.0
        %1336 = vmatpush1.msra.mxu0 0.0
        %1337 = vmatprep.subr.mxu0 0.0
        %1338 = vmatpush1.msra.mxu0 0.0
        %1339 = vmatprep.subr.mxu0 0.0
        %1340 = vmatpush1.msra.mxu0 0.0
        %1341 = vmatprep.subr.mxu0 0.0
        %1342 = vmatpush1.msra.mxu0 %v1306
        %1343 = vmatprep.subr.mxu0 0.0
        %1344 = vmatpush1.msra.mxu0 %v1305
        %1345 = vmatprep.subr.mxu0 0.0
        %1346 = vmatpush1.msra.mxu0 %v1304
        %1347 = vmatprep.subr.mxu0 0.0
        %1348 = vmatpush1.msra.mxu0 %v1303
        %1349 = vmatprep.subr.mxu0 0.0
        %1350 = vmatpush2.msra.mxu0 0.0
        %1351 = vmatprep.subr.mxu0 0.0
        %1352 = vmatpush2.msra.mxu0 0.0
        %1353 = vmatprep.subr.mxu0 0.0
        %1354 = vmatpush2.msra.mxu0 0.0
        %1355 = vmatprep.subr.mxu0 0.0
        %1356 = vmatpush2.msra.mxu0 0.0
        %1357 = vmatprep.subr.mxu0 0.0
        %1358 = vmatpush2.msra.mxu0 0.0
        %1359 = vmatprep.subr.mxu0 0.0
        %1360 = vmatpush2.msra.mxu0 0.0
        %1361 = vmatprep.subr.mxu0 0.0
        %1362 = vmatpush2.msra.mxu0 0.0
        %1363 = vmatprep.subr.mxu0 0.0
        %1364 = vmatpush2.msra.mxu0 0.0
        %1365 = vmatprep.subr.mxu0 0.0
        %1366 = vmatpush2.msra.mxu0 0.0
        %1367 = vmatprep.subr.mxu0 0.0
        %1368 = vmatpush2.msra.mxu0 0.0
        %1369 = vmatprep.subr.mxu0 0.0
        %1370 = vmatpush2.msra.mxu0 0.0
        %1371 = vmatprep.subr.mxu0 0.0
        %1372 = vmatpush2.msra.mxu0 0.0
        %1373 = vmatprep.subr.mxu0 0.0
        %1374 = vmatpush2.msra.mxu0 0.0
        %1375 = vmatprep.subr.mxu0 0.0
        %1376 = vmatpush2.msra.mxu0 0.0
        %1377 = vmatprep.subr.mxu0 0.0
        %1378 = vmatpush2.msra.mxu0 0.0
        %1379 = vmatprep.subr.mxu0 0.0
        %1380 = vmatpush2.msra.mxu0 0.0
        %1381 = vmatprep.mubr.f32.mxu0 0.0
        %1382 = vmatmul.mubr.f32.gmra.mxu0 %v1315
        %v1383 = vpop.f32.mrf.mxu0
        %v1384 = vadd.f32 %v1312, %v1383
        %v1385 = vpop.f32.mrf.mxu0
        %1386 = vdwg.mxu0
        %v1387 = vmax.f32 %v1384, 0.0
        %v1388 = vld [vmem:[%s8] sm:$0xff]
        %v1389 = vld [vmem:[%s8 + $0x8] sm:$0xff]
        %v1390 = vld [vmem:[%s8 + $0x10] sm:$0xff]
        %v1391 = vld [vmem:[%s8 + $0x18] sm:$0xff]
        %v1392 = vld [vmem:[%s8 + $0x20] sm:$0xff]
        %v1393 = vld [vmem:[%s8 + $0x28] sm:$0xff]
        %v1394 = vld [vmem:[%s8 + $0x30] sm:$0xff]
        %v1395 = vld [vmem:[%s8 + $0x38] sm:$0xff]
        %v1396 = vlaneseq
        %v1397 = vshrl.u32 %v1396, 7
        %v1398 = vsub.s32 3, %v1397
        %v1399 = vrot.slane %v424, %v1398
        %vm1400 = vcmask 523264
        %v1402 = vsel %vm1400, %v1387, 0
        %1404 = vmatprep.subr.mxu0 0.0
        %1405 = vmatpush1.msra.mxu0 0.0
        %1406 = vmatprep.subr.mxu0 0.0
        %1407 = vmatpush1.msra.mxu0 0.0
        %1408 = vmatprep.subr.mxu0 0.0
        %1409 = vmatpush1.msra.mxu0 0.0
        %1410 = vmatprep.subr.mxu0 0.0
        %1411 = vmatpush1.msra.mxu0 0.0
        %1412 = vmatprep.subr.mxu0 0.0
        %1413 = vmatpush1.msra.mxu0 0.0
        %1414 = vmatprep.subr.mxu0 0.0
        %1415 = vmatpush1.msra.mxu0 0.0
        %1416 = vmatprep.subr.mxu0 0.0
        %1417 = vmatpush1.msra.mxu0 0.0
        %1418 = vmatprep.subr.mxu0 0.0
        %1419 = vmatpush1.msra.mxu0 0.0
        %1420 = vmatprep.subr.mxu0 0.0
        %1421 = vmatpush1.msra.mxu0 %v1395
        %1422 = vmatprep.subr.mxu0 0.0
        %1423 = vmatpush1.msra.mxu0 %v1394
        %1424 = vmatprep.subr.mxu0 0.0
        %1425 = vmatpush1.msra.mxu0 %v1393
        %1426 = vmatprep.subr.mxu0 0.0
        %1427 = vmatpush1.msra.mxu0 %v1392
        %1428 = vmatprep.subr.mxu0 0.0
        %1429 = vmatpush1.msra.mxu0 %v1391
        %1430 = vmatprep.subr.mxu0 0.0
        %1431 = vmatpush1.msra.mxu0 %v1390
        %1432 = vmatprep.subr.mxu0 0.0
        %1433 = vmatpush1.msra.mxu0 %v1389
        %1434 = vmatprep.subr.mxu0 0.0
        %1435 = vmatpush1.msra.mxu0 %v1388
        %1436 = vmatprep.subr.mxu0 0.0
        %1437 = vmatpush2.msra.mxu0 0.0
        %1438 = vmatprep.subr.mxu0 0.0
        %1439 = vmatpush2.msra.mxu0 0.0
        %1440 = vmatprep.subr.mxu0 0.0
        %1441 = vmatpush2.msra.mxu0 0.0
        %1442 = vmatprep.subr.mxu0 0.0
        %1443 = vmatpush2.msra.mxu0 0.0
        %1444 = vmatprep.subr.mxu0 0.0
        %1445 = vmatpush2.msra.mxu0 0.0
        %1446 = vmatprep.subr.mxu0 0.0
        %1447 = vmatpush2.msra.mxu0 0.0
        %1448 = vmatprep.subr.mxu0 0.0
        %1449 = vmatpush2.msra.mxu0 0.0
        %1450 = vmatprep.subr.mxu0 0.0
        %1451 = vmatpush2.msra.mxu0 0.0
        %1452 = vmatprep.subr.mxu0 0.0
        %1453 = vmatpush2.msra.mxu0 0.0
        %1454 = vmatprep.subr.mxu0 0.0
        %1455 = vmatpush2.msra.mxu0 0.0
        %1456 = vmatprep.subr.mxu0 0.0
        %1457 = vmatpush2.msra.mxu0 0.0
        %1458 = vmatprep.subr.mxu0 0.0
        %1459 = vmatpush2.msra.mxu0 0.0
        %1460 = vmatprep.subr.mxu0 0.0
        %1461 = vmatpush2.msra.mxu0 0.0
        %1462 = vmatprep.subr.mxu0 0.0
        %1463 = vmatpush2.msra.mxu0 0.0
        %1464 = vmatprep.subr.mxu0 0.0
        %1465 = vmatpush2.msra.mxu0 0.0
        %1466 = vmatprep.subr.mxu0 0.0
        %1467 = vmatpush2.msra.mxu0 0.0
        %1468 = vmatprep.mubr.f32.mxu0 0.0
        %1469 = vmatmul.mubr.f32.gmra.mxu0 %v1402
        %v1470 = vpop.f32.mrf.mxu0
        %v1471 = vadd.f32 %v1399, %v1470
        %v1472 = vpop.f32.mrf.mxu0
        %1473 = vdwg.mxu0
        %v1474 = vadd.f32 %v1302, %v1471
        %v1475 = vsel %vm436, %v1474, 0.0
        %1476 = vadd.xlane.f32.xlu0 %v1475
        %v1477 = vpop.xlane.xlu0 %1476
        %v1478 = vmul.f32 %v1477, %v1282
        %v1479 = vsub.f32 %v1474, %v1478
        %v1480 = vmul.f32 %v1479, %v1479
        %v1481 = vsel %vm436, %v1480, 0.0
        %1482 = vadd.xlane.f32.xlu0 %v1481
        %v1483 = vpop.xlane.xlu0 %1482
        %v1484 = vmul.f32 %v1483, %v1282
        %v1485 = vadd.f32 %v1484, 1e-05
        %v1486 = vrsqrt.pop %v1485
        %v1487 = vmul.f32 %v1479, %v1486
        %v1488 = vlaneseq
        %v1489 = vshrl.u32 %v1488, 7
        %v1490 = vsub.s32 4, %v1489
        %v1491 = vrot.slane %v424, %v1490
        %v1492 = vmul.f32 %v1487, %v1491
        %v1493 = vlaneseq
        %v1494 = vshrl.u32 %v1493, 7
        %v1495 = vsub.s32 5, %v1494
        %v1496 = vrot.slane %v424, %v1495
        %v1497 = vadd.f32 %v1492, %v1496
        %1498 = vst.msk [vmem:[%s420] sm:$0xff] %vm436, %v1497
        %s1499 = sand.u32 %s258, 1
        %s1500 = scalar_lea.sflag [#allocation4], %s1499
        %s1501 = sand.u32 %s258, 1
        %s1502 = smul.addr %s1501, 8
        %s1503 = scalar_lea.vmem [#allocation8], %s1502
        // Predicated region
        $region73: #{tpu_custom_call.1} parent=59 // pred_check
          %p1504 = pneg %p268
        $region74: #{tpu_custom_call.1} parent=59 // pred_check_branch
          %1506 = sbr.rel (%p1504) target = $region76
        $region75: #{tpu_custom_call.1} parent=59 // pred_region
          %s1508 = ssub.s32 128, 128
          %1509 = vsyncadd %s1500, %s1508
          %s1510 = smul.addr %s30, 128
          %s1511 = scalar_lea.hbm %s10, %s1510
          %s1513 = sshll.u32 %s1503, 4
          %s1514 = int_to_ptr.vmem [resolvable:$true] %s1513
          %1516 = dma.vmem_to_hbm [thread:$0]  %s1514, 128, %s1511, %s1500
        $region76: #{tpu_custom_call.1} parent=59 // pred_fallthru
          _
      $region60: #{tpu_custom_call.1} parent=5 // pred_fallthru
        _
      %p1517 = scmp.le.s32.totalorder 2, %s25
      // Predicated region
      $region77: #{tpu_custom_call.1} parent=5 // pred_check
        %p1518 = pneg %p1517
      $region78: #{tpu_custom_call.1} parent=5 // pred_check_branch
        %1520 = sbr.rel (%p1518) target = $region80
      $region79: #{tpu_custom_call.1} parent=5 // pred_region
        %s1521 = ssub.s32 %s25, 2
        // Predicated region
        $region81: #{tpu_custom_call.1} parent=79 // pred_check
          %p1522 = pneg %p274
        $region82: #{tpu_custom_call.1} parent=79 // pred_check_branch
          %1524 = sbr.rel (%p1522) target = $region84
        $region83: #{tpu_custom_call.1} parent=79 // pred_region
          %s1525 = sand.u32 %s259, 1
          %s1526 = scalar_lea.sflag [#allocation4], %s1525
          %s1527 = sand.u32 %s259, 1
          %s1528 = smul.addr %s1527, 8
          %s1529 = scalar_lea.vmem [#allocation8], %s1528
          %1530 = dma.done %s1526, 128
        $region84: #{tpu_custom_call.1} parent=79 // pred_fallthru
          _
      $region80: #{tpu_custom_call.1} parent=5 // pred_fallthru
        _
    $region6: #{tpu_custom_call.1} parent=1 // loop_footer
      %s29 = sadd.s32 1, %s25
    $region7: #{tpu_custom_call.1} parent=1 // loop_footer_branch
      %24 = sbr.rel target = $region3
    $region8: #{tpu_custom_call.1} parent=1 // loop_exit
      _
    %1531 = vsyncpa [#allocation3], 1
    %s1532 = scalar_lea.sflag [#allocation3], 1
    %1533 = vsyncpa %s1532, 1
    %1534 = vsyncpa [#allocation6], 1
    %s1535 = scalar_lea.sflag [#allocation6], 1
    %1536 = vsyncpa %s1535, 1
    %1537 = vsyncpa [#allocation4], 1
    %s1538 = scalar_lea.sflag [#allocation4], 1
    %1539 = vsyncpa %s1538, 1

</llo_original>
